<compile_context>
chip_gen: v6e
topology: v6e:2x2x1
jax: 0.10.0
libtpu: 0.0.40
codegen_flags: <defaults>
</compile_context>

<pallas_src>
import functools

import jax
import jax.numpy as jnp
from jax import lax
from jax.experimental import pallas as pl
from jax.experimental.pallas import tpu as pltpu


# ----------------------------------------------------------------------------
# Fused bottleneck kernel: one grid step per (batch tile, row tile).
# ----------------------------------------------------------------------------
def _bottleneck_kernel(
    x_ref,      # (Bt, Ht, W, Cin)      tile rows of x (f32)
    xu_ref,     # (Bt, 1, W, Cin)       row above the tile (clamped at border)
    xd_ref,     # (Bt, 1, W, Cin)       row below the tile (clamped at border)
    w1_ref,     # (Cin, Cw)     bf16    1x1 conv #1, BN1 scale folded in
    b1_ref,     # (1, Cw)       f32     folded BN1 bias
    w2_ref,     # (3, 3*Cw, Cw) bf16    3x3 conv, per-dy (dx, ci) -> K, BN2 scale folded
    b2_ref,     # (1, Cw)       f32
    w3_ref,     # (Cw, Cout)    bf16    1x1 conv #2, BN3 scale folded in
    b3_ref,     # (1, Cout)     f32
    out_ref,    # (Bt, Ht, W, Cout)     f32
    t1p_ref,    # scratch VMEM (Bt, Ht + 2, W + 2, Cw) bf16  conv1 slab, padded
    *,
    Bt, Ht, W, Cin, Cw, Cout,
):
  f32, bf16 = jnp.float32, jnp.bfloat16
  hb = pl.program_id(1)
  n_h = pl.num_programs(1)
  Hs = Ht + 2                     # tile rows + 1-row halo on each side
  M2 = Bt * Ht * W

  w1 = w1_ref[...]
  b1 = b1_ref[...]

  def conv1_rows(x4d, rows):
    # 1x1 conv (+folded BN1 scale) + bias + relu, emitted in bf16 for the slab.
    m = Bt * rows * W
    t = jnp.dot(x4d.reshape(m, Cin).astype(bf16), w1,
                preferred_element_type=f32)
    t = jnp.maximum(t + b1, 0.0)
    return t.reshape(Bt, rows, W, Cw).astype(bf16)

  # ---- conv1 (1x1) + bn1 + relu: main tile rows -> slab rows 1..Ht ----------
  t1p_ref[:, 1:Ht + 1, 1:W + 1, :] = conv1_rows(x_ref[...], Ht)

  # Zero the two border columns (3x3 conv left/right zero padding).  The
  # scratch persists across grid steps (and is per-core under megacore), so
  # this is refreshed every step; it is only 2*Hs rows of Cw values per batch.
  zcol = jnp.zeros((Bt, Hs, 1, Cw), bf16)
  t1p_ref[:, :, 0:1, :] = zcol
  t1p_ref[:, :, W + 1:W + 2, :] = zcol

  # ---- halo rows: conv1 of the neighbouring image row, or zeros at borders --
  @pl.when(hb == 0)
  def _():
    t1p_ref[:, 0:1, 1:W + 1, :] = jnp.zeros((Bt, 1, W, Cw), bf16)

  @pl.when(hb > 0)
  def _():
    t1p_ref[:, 0:1, 1:W + 1, :] = conv1_rows(xu_ref[...], 1)

  @pl.when(hb == n_h - 1)
  def _():
    t1p_ref[:, Ht + 1:Ht + 2, 1:W + 1, :] = jnp.zeros((Bt, 1, W, Cw), bf16)

  @pl.when(hb < n_h - 1)
  def _():
    t1p_ref[:, Ht + 1:Ht + 2, 1:W + 1, :] = conv1_rows(xd_ref[...], 1)

  # ---- conv2 (3x3, pad=1, stride=1) + bn2 + relu ---------------------------
  # Three accumulating matmuls over dy; each one concatenates only the 3 dx
  # views (K = 3*Cw), so the peak im2col footprint is ~3x smaller than a
  # single fat K = 9*Cw slab.  Slab is already bf16 -> no cast here.
  t2 = None
  for dy in range(3):
    p = jnp.concatenate(
        [t1p_ref[:, dy:dy + Ht, dx:dx + W, :] for dx in range(3)],
        axis=-1).reshape(M2, 3 * Cw)
    d = jnp.dot(p, w2_ref[dy], preferred_element_type=f32)
    t2 = d if t2 is None else t2 + d
  t2 = jnp.maximum(t2 + b2_ref[...], 0.0)

  # ---- conv3 (1x1) + bn3 ---------------------------------------------------
  t3 = jnp.dot(t2.astype(bf16), w3_ref[...], preferred_element_type=f32)
  t3 = t3 + b3_ref[...]

  # ---- residual add + relu (identity path; fresh f32 read of x) ------------
  resid = x_ref[...].reshape(M2, Cin)
  out = jnp.maximum(t3 + resid, 0.0)
  out_ref[...] = out.reshape(Bt, Ht, W, Cout).astype(out_ref.dtype)


# ----------------------------------------------------------------------------
# VMEM model & tile-size heuristic.
# ----------------------------------------------------------------------------
def _vmem_capacity_bytes():
  """Physical per-core VMEM; conservative (v7x) fallback if the query fails."""
  try:
    info = pltpu.get_tpu_info()
    cap = getattr(info, "vmem_capacity_bytes", None)
    if cap:
      return int(cap)
  except Exception:
    pass
  return 64 * 1024 * 1024


def _vmem_estimate(Bt, Ht, W, Cin, Cw, Cout):
  """Per-step working-set estimate (includes bf16 copies and f32 matmul results)."""
  f32b, bf16b = 4, 2
  Hs, Wp = Ht + 2, W + 2
  m2 = Bt * Ht * W
  est = 0
  est += 2 * Bt * Ht * W * Cin * f32b          # x block (double buffered)
  est += 2 * 2 * Bt * W * Cin * f32b           # halo row blocks (double buffered)
  est += 2 * Bt * Ht * W * Cout * f32b         # out block (double buffered)
  est += Bt * Hs * Wp * Cw * bf16b             # bf16 conv1 slab (scratch)
  est += m2 * Cin * bf16b                      # x -> bf16 conv1 operand copy
  est += m2 * Cw * (f32b + bf16b)              # conv1 f32 result + bf16 store cast
  est += 2 * m2 * 3 * Cw * bf16b               # per-dy im2col slab (2 live)
  est += m2 * Cw * (f32b + bf16b)              # t2 accumulator + bf16 cast
  est += m2 * Cout * f32b                      # t3
  est += m2 * Cout * f32b                      # residual add / output value
  return est


def _choose_tiles(N, H, W, Cin, Cw, Cout, block_b, block_h,
                  target_rows=512, vmem_budget=32 * 1024 * 1024,
                  min_grid_steps=2):
  h_divs = [d for d in range(1, H + 1) if H % d == 0]
  n_divs = [d for d in range(1, N + 1) if N % d == 0]
  fixed_b = block_b is not None
  fixed_h = block_h is not None
  if block_h is None:
    cands = [d for d in h_divs if d * W >= target_rows] or [H]
    block_h = cands[0]
  if block_b is None:
    cands = [d for d in n_divs if d * block_h * W >= target_rows] or [N]
    block_b = cands[0]
  assert H % block_h == 0 and N % block_b == 0

  def shrink(bb, bh):
    sb = [d for d in n_divs if d < bb]
    sh = [d for d in h_divs if d < bh]
    if bb > 1 and sb and not fixed_b:
      return sb[-1], bh
    if sh and not fixed_h:
      return bb, sh[-1]
    return bb, bh

  # Fit the (over-)estimated per-step working set under the VMEM budget.
  while _vmem_estimate(block_b, block_h, W, Cin, Cw, Cout) > vmem_budget:
    nb, nh = shrink(block_b, block_h)
    if (nb, nh) == (block_b, block_h):
      break
    block_b, block_h = nb, nh

  # Guarantee >= min_grid_steps grid steps: v7x has 2 TensorCores per chip and
  # a 1-step grid also gives the BlockSpec pipeline nothing to prefetch.
  while (N // block_b) * (H // block_h) < min_grid_steps:
    nb, nh = shrink(block_b, block_h)
    if (nb, nh) == (block_b, block_h):
      break
    block_b, block_h = nb, nh

  return block_b, block_h


# ----------------------------------------------------------------------------
# Wrapper.
# ----------------------------------------------------------------------------
def bottleneck_pallas(x_nhwc, params, *, block_b=None, block_h=None,
                      vmem_limit_bytes=None, target_rows=512):
  """Runs the fused bottleneck kernel. x_nhwc: (N, H, W, Cin) float32."""
  N, H, W, Cin = x_nhwc.shape
  w1, s1, b1, w2, s2, b2, w3, s3, b3 = params
  Cw = w1.shape[1]
  Cout = w3.shape[1]
  assert Cin == Cout, "identity residual requires inplanes == planes*expansion"
  # TODO(synk): the stride>1 / downsample / groups>1 / dilation>1 branch of
  # Bottleneck (non-default config) is not implemented in this kernel.

  cap = _vmem_capacity_bytes()
  if vmem_limit_bytes is None:
    # Leave headroom below physical VMEM (v7x: 64 MiB; v5e/v6e: 128 MiB).
    vmem_limit_bytes = max(32 << 20, min(cap - (16 << 20), 100 << 20))
  tile_budget = int(vmem_limit_bytes * 0.6)

  Bt, Ht = _choose_tiles(N, H, W, Cin, Cw, Cout, block_b, block_h,
                         target_rows=target_rows, vmem_budget=tile_budget)
  grid = (N // Bt, H // Ht)

  # Fold the BN scales into the conv weights (per output channel) and ship the
  # matmul operands as bf16 (f32 accumulation on the MXU); biases stay f32.
  # conv2 weights are laid out (dy, dx*Cw + ci, co) so each dy slice is one
  # (3*Cw, Cw) matmul weight.
  w1b = (w1 * s1).astype(jnp.bfloat16)                                  # (Cin, Cw)
  w2b = (w2 * s2.reshape(1, 1, 1, -1)).reshape(3, 3 * Cw, Cw).astype(jnp.bfloat16)
  w3b = (w3 * s3).astype(jnp.bfloat16)                                  # (Cw, Cout)

  def const_spec(a):
    nd = a.ndim
    return pl.BlockSpec(a.shape, lambda n, h: (0,) * nd)

  x_spec = pl.BlockSpec((Bt, Ht, W, Cin), lambda n, h: (n, h, 0, 0))
  # One-row halos above/below the tile.  Row indices are clamped at the image
  # boundary; the kernel overwrites out-of-image halo rows with zeros.
  xu_spec = pl.BlockSpec((Bt, 1, W, Cin),
                         lambda n, h: (n, jnp.maximum(h * Ht - 1, 0), 0, 0))
  xd_spec = pl.BlockSpec((Bt, 1, W, Cin),
                         lambda n, h: (n, jnp.minimum((h + 1) * Ht, H - 1), 0, 0))

  kernel = functools.partial(_bottleneck_kernel, Bt=Bt, Ht=Ht, W=W,
                             Cin=Cin, Cw=Cw, Cout=Cout)

  return pl.pallas_call(
      kernel,
      out_shape=jax.ShapeDtypeStruct((N, H, W, Cout), jnp.float32),
      grid_spec=pltpu.PrefetchScalarGridSpec(
          num_scalar_prefetch=0,
          grid=grid,
          in_specs=[x_spec, xu_spec, xd_spec,
                    const_spec(w1b), const_spec(b1),
                    const_spec(w2b), const_spec(b2),
                    const_spec(w3b), const_spec(b3)],
          out_specs=pl.BlockSpec((Bt, Ht, W, Cout), lambda n, h: (n, h, 0, 0)),
          scratch_shapes=[pltpu.VMEM((Bt, Ht + 2, W + 2, Cw), jnp.bfloat16)]),
      compiler_params=pltpu.CompilerParams(
          dimension_semantics=("parallel", "parallel"),
          vmem_limit_bytes=vmem_limit_bytes),
  )(x_nhwc, x_nhwc, x_nhwc, w1b, b1, w2b, b2, w3b, b3)


# ----------------------------------------------------------------------------
# Parameter construction (mirrors the PyTorch module's shapes) and pure-JAX
# references.
# ----------------------------------------------------------------------------
def make_params(key, inplanes, planes, base_width=64, groups=1):
  expansion = 4
  width = int(planes * (base_width / 64.0)) * groups
  cout = planes * expansion
  ks = jax.random.split(key, 6)

  def normal(k, shape, scale=0.05):
    return (scale * jax.random.normal(k, shape)).astype(jnp.float32)

  # torch conv weights (OIHW), converted to the layouts the kernel uses.
  w1_t = normal(ks[0], (width, inplanes, 1, 1))     # conv1: (Cw, Cin, 1, 1)
  w2_t = normal(ks[1], (width, width, 3, 3))        # conv2: (Cw, Cw, 3, 3)
  w3_t = normal(ks[2], (cout, width, 1, 1))         # conv3: (Cout, Cw, 1, 1)

  def bn(kk, c):
    kg, kb, km, kv = jax.random.split(kk, 4)
    gamma = 1.0 + normal(kg, (c,))
    beta = normal(kb, (c,))
    mean = normal(km, (c,))
    var = jnp.abs(normal(kv, (c,))) + 0.5
    eps = 1e-5
    scale = gamma / jnp.sqrt(var + eps)
    bias = beta - mean * scale
    return scale.astype(jnp.float32), bias.astype(jnp.float32)

  s1, b1 = bn(ks[3], width)
  s2, b2 = bn(ks[4], width)
  s3, b3 = bn(ks[5], cout)

  # Kernel layouts: 1x1 convs as (Cin, Cout) matmul weights; 3x3 as HWIO.
  w1 = jnp.transpose(w1_t[:, :, 0, 0], (1, 0))           # (Cin, Cw)
  w2 = jnp.transpose(w2_t, (2, 3, 1, 0))                 # (3, 3, Cw_in, Cw_out)
  w3 = jnp.transpose(w3_t[:, :, 0, 0], (1, 0))           # (Cw, Cout)

  return (w1, s1.reshape(1, -1), b1.reshape(1, -1),
          w2, s2.reshape(1, -1), b2.reshape(1, -1),
          w3, s3.reshape(1, -1), b3.reshape(1, -1))


def bottleneck_reference(x_nhwc, params, *, matmul_dtype=jnp.bfloat16):
  """Pure-JAX (XLA conv) reference.  With matmul_dtype=bf16 it uses the same
  precision policy as the kernel (BN scale folded into the conv weights before
  the bf16 cast, f32 accumulation); with f32 it is the exact module math."""
  w1, s1, b1, w2, s2, b2, w3, s3, b3 = params
  dn = ("NHWC", "HWIO", "NHWC")
  f32 = jnp.float32

  def conv(x, w, padding):
    return lax.conv_general_dilated(
        x.astype(matmul_dtype), w.astype(matmul_dtype), (1, 1), padding,
        dimension_numbers=dn, preferred_element_type=f32)

  w1f = (w1 * s1)[None, None, :, :]
  w2f = w2 * s2.reshape(1, 1, 1, -1)
  w3f = (w3 * s3)[None, None, :, :]

  t = jnp.maximum(conv(x_nhwc, w1f, "VALID") + b1[0], 0.0)
  t = jnp.maximum(conv(t, w2f, ((1, 1), (1, 1))) + b2[0], 0.0)
  t = conv(t, w3f, "VALID") + b3[0]
  return jnp.maximum(t + x_nhwc, 0.0)


if __name__ == "__main__":
  key = jax.random.PRNGKey(0)
  k_x, k_p = jax.random.split(key)

  # Small shapes: planes=4 -> width=4, out channels = planes*4 = 16.
  # downsample=None requires inplanes == planes*expansion and stride == 1.
  planes = 4
  inplanes = planes * 4          # 16
  N, H, W = 2, 16, 16

  # PyTorch-style NCHW input, converted to NHWC for the kernel.
  x_nchw = jax.random.normal(k_x, (N, inplanes, H, W), dtype=jnp.float32)
  x_nhwc = jnp.transpose(x_nchw, (0, 2, 3, 1))

  params = make_params(k_p, inplanes, planes)
  ref_bf16 = bottleneck_reference(x_nhwc, params)                       # matched precision
  ref_f32 = bottleneck_reference(x_nhwc, params, matmul_dtype=jnp.float32)

  # 1) explicit multi-tile grid (2 batch tiles x 2 row tiles) -> exercises the
  #    interior-halo path.
  out_a = jax.block_until_ready(
      bottleneck_pallas(x_nhwc, params, block_b=1, block_h=8))
  # 2) default heuristic tiling (min-grid constraint forces >= 2 steps).
  out_b = jax.block_until_ready(bottleneck_pallas(x_nhwc, params))

  out_nchw = jnp.transpose(out_a, (0, 3, 1, 2))  # back to PyTorch NCHW
  assert out_nchw.shape == (N, inplanes, H, W)
  assert jnp.allclose(out_a, ref_bf16, rtol=2e-3, atol=2e-3), (
      "mismatch vs matched-precision reference (tiled grid)")
  assert jnp.allclose(out_b, ref_bf16, rtol=2e-3, atol=2e-3), (
      "mismatch vs matched-precision reference (default tiling)")
  assert jnp.allclose(out_a, ref_f32, rtol=1e-2, atol=1e-2), (
      "mismatch vs full-f32 module semantics")

  print("KERNEL_OK")
</pallas_src>

<mosaic_0001>
module attributes {stable_mosaic.version = 11 : i64} {
  func.func @_bottleneck_kernel(%arg0: i32, %arg1: i32, %arg2: memref<1x8x16x16xf32, #tpu.memory_space<vmem>>, %arg3: memref<1x1x16x16xf32, #tpu.memory_space<vmem>>, %arg4: memref<1x1x16x16xf32, #tpu.memory_space<vmem>>, %arg5: memref<16x4xbf16, #tpu.memory_space<vmem>>, %arg6: memref<1x4xf32, #tpu.memory_space<vmem>>, %arg7: memref<3x12x4xbf16, #tpu.memory_space<vmem>>, %arg8: memref<1x4xf32, #tpu.memory_space<vmem>>, %arg9: memref<4x16xbf16, #tpu.memory_space<vmem>>, %arg10: memref<1x16xf32, #tpu.memory_space<vmem>>, %arg11: memref<1x8x16x16xf32, #tpu.memory_space<vmem>>, %arg12: memref<1x10x18x4xbf16, #tpu.memory_space<vmem>>) attributes {dimension_semantics = [#tpu.dimension_semantics<parallel>, #tpu.dimension_semantics<parallel>], iteration_bounds = array<i64: 2, 2>, scalar_prefetch = 0 : i64, scratch_operands = 1 : i64, tpu.core_type = #tpu.core_type<tc>, window_params = [{transform_indices = @transform_0, window_bounds = array<i64: 1, 8, 16, 16>}, {transform_indices = @transform_1, window_bounds = array<i64: 1, 1, 16, 16>}, {transform_indices = @transform_2, window_bounds = array<i64: 1, 1, 16, 16>}, {pipeline_mode = #tpu.pipeline_mode<synchronous>, transform_indices = @transform_3, window_bounds = array<i64: 16, 4>}, {pipeline_mode = #tpu.pipeline_mode<synchronous>, transform_indices = @transform_4, window_bounds = array<i64: 1, 4>}, {pipeline_mode = #tpu.pipeline_mode<synchronous>, transform_indices = @transform_5, window_bounds = array<i64: 3, 12, 4>}, {pipeline_mode = #tpu.pipeline_mode<synchronous>, transform_indices = @transform_6, window_bounds = array<i64: 1, 4>}, {pipeline_mode = #tpu.pipeline_mode<synchronous>, transform_indices = @transform_7, window_bounds = array<i64: 4, 16>}, {pipeline_mode = #tpu.pipeline_mode<synchronous>, transform_indices = @transform_8, window_bounds = array<i64: 1, 16>}, {transform_indices = @transform_9, window_bounds = array<i64: 1, 8, 16, 16>}]} {
    %c0 = arith.constant 0 : index
    %c0_0 = arith.constant 0 : index
    %0 = vector.load %arg5[%c0, %c0_0] : memref<16x4xbf16, #tpu.memory_space<vmem>>, vector<16x4xbf16>
    %c0_1 = arith.constant 0 : index
    %c0_2 = arith.constant 0 : index
    %1 = vector.load %arg6[%c0_1, %c0_2] : memref<1x4xf32, #tpu.memory_space<vmem>>, vector<1x4xf32>
    %c0_3 = arith.constant 0 : index
    %c0_4 = arith.constant 0 : index
    %c0_5 = arith.constant 0 : index
    %c0_6 = arith.constant 0 : index
    %2 = vector.load %arg2[%c0_3, %c0_4, %c0_5, %c0_6] : memref<1x8x16x16xf32, #tpu.memory_space<vmem>>, vector<1x8x16x16xf32>
    %3 = vector.shape_cast %2 : vector<1x8x16x16xf32> to vector<128x16xf32>
    %4 = arith.truncf %3 : vector<128x16xf32> to vector<128x16xbf16>
    %cst = arith.constant dense<0.000000e+00> : vector<128x4xf32>
    %5 = tpu.matmul %4, %0, %cst {dimension_numbers = #tpu.dot_dimension_numbers<[1], [0], [0], [1], [0, 0, 1, 1], [], []>} : vector<128x16xbf16>, vector<16x4xbf16>, vector<128x4xf32> -> vector<128x4xf32>
    %6 = vector.broadcast %1 : vector<1x4xf32> to vector<128x4xf32>
    %7 = arith.addf %5, %6 : vector<128x4xf32>
    %cst_7 = arith.constant 0.000000e+00 : f32
    %8 = vector.broadcast %cst_7 : f32 to vector<128x4xf32>
    %9 = arith.maximumf %7, %8 : vector<128x4xf32>
    %10 = vector.shape_cast %9 : vector<128x4xf32> to vector<1x8x16x4xf32>
    %11 = arith.truncf %10 : vector<1x8x16x4xf32> to vector<1x8x16x4xbf16>
    %c0_8 = arith.constant 0 : index
    %c1 = arith.constant 1 : index
    %c1_9 = arith.constant 1 : index
    %c0_10 = arith.constant 0 : index
    %12 = vector.load %arg12[%c0_8, %c1, %c1_9, %c0_10] : memref<1x10x18x4xbf16, #tpu.memory_space<vmem>>, vector<1x8x16x4xbf16>
    tpu.vector_store %arg12[%c0_8, %c1, %c1_9, %c0_10], %11 {strides = array<i32>} : memref<1x10x18x4xbf16, #tpu.memory_space<vmem>>, vector<1x8x16x4xbf16>,
    %cst_11 = arith.constant 0.000000e+00 : bf16
    %13 = vector.broadcast %cst_11 : bf16 to vector<1x10x1x4xbf16>
    %c0_12 = arith.constant 0 : index
    %c0_13 = arith.constant 0 : index
    %c0_14 = arith.constant 0 : index
    %c0_15 = arith.constant 0 : index
    %14 = vector.load %arg12[%c0_12, %c0_13, %c0_14, %c0_15] : memref<1x10x18x4xbf16, #tpu.memory_space<vmem>>, vector<1x10x1x4xbf16>
    tpu.vector_store %arg12[%c0_12, %c0_13, %c0_14, %c0_15], %13 {strides = array<i32>} : memref<1x10x18x4xbf16, #tpu.memory_space<vmem>>, vector<1x10x1x4xbf16>,
    %c0_16 = arith.constant 0 : index
    %c0_17 = arith.constant 0 : index
    %c17 = arith.constant 17 : index
    %c0_18 = arith.constant 0 : index
    %15 = vector.load %arg12[%c0_16, %c0_17, %c17, %c0_18] : memref<1x10x18x4xbf16, #tpu.memory_space<vmem>>, vector<1x10x1x4xbf16>
    tpu.vector_store %arg12[%c0_16, %c0_17, %c17, %c0_18], %13 {strides = array<i32>} : memref<1x10x18x4xbf16, #tpu.memory_space<vmem>>, vector<1x10x1x4xbf16>,
    %c0_i32 = arith.constant 0 : i32
    %16 = arith.cmpi eq, %arg1, %c0_i32 : i32
    %17 = arith.extui %16 : i1 to i32
    %c0_i32_19 = arith.constant 0 : i32
    %18 = arith.cmpi ne, %17, %c0_i32_19 : i32
    scf.if %18 {
      %cst_89 = arith.constant 0.000000e+00 : bf16
      %72 = vector.broadcast %cst_89 : bf16 to vector<1x1x16x4xbf16>
      %c0_90 = arith.constant 0 : index
      %c0_91 = arith.constant 0 : index
      %c1_92 = arith.constant 1 : index
      %c0_93 = arith.constant 0 : index
      %73 = vector.load %arg12[%c0_90, %c0_91, %c1_92, %c0_93] : memref<1x10x18x4xbf16, #tpu.memory_space<vmem>>, vector<1x1x16x4xbf16>
      tpu.vector_store %arg12[%c0_90, %c0_91, %c1_92, %c0_93], %72 {strides = array<i32>} : memref<1x10x18x4xbf16, #tpu.memory_space<vmem>>, vector<1x1x16x4xbf16>,
    } else {
    }
    %c0_i32_20 = arith.constant 0 : i32
    %19 = arith.cmpi sgt, %arg1, %c0_i32_20 : i32
    %20 = arith.extui %19 : i1 to i32
    %c0_i32_21 = arith.constant 0 : i32
    %21 = arith.cmpi ne, %20, %c0_i32_21 : i32
    scf.if %21 {
      %c0_89 = arith.constant 0 : index
      %c0_90 = arith.constant 0 : index
      %c0_91 = arith.constant 0 : index
      %c0_92 = arith.constant 0 : index
      %72 = vector.load %arg3[%c0_89, %c0_90, %c0_91, %c0_92] : memref<1x1x16x16xf32, #tpu.memory_space<vmem>>, vector<1x1x16x16xf32>
      %73 = vector.shape_cast %72 : vector<1x1x16x16xf32> to vector<16x16xf32>
      %74 = arith.truncf %73 : vector<16x16xf32> to vector<16x16xbf16>
      %cst_93 = arith.constant dense<0.000000e+00> : vector<16x4xf32>
      %75 = tpu.matmul %74, %0, %cst_93 {dimension_numbers = #tpu.dot_dimension_numbers<[1], [0], [0], [1], [0, 0, 1, 1], [], []>} : vector<16x16xbf16>, vector<16x4xbf16>, vector<16x4xf32> -> vector<16x4xf32>
      %76 = vector.broadcast %1 : vector<1x4xf32> to vector<16x4xf32>
      %77 = arith.addf %75, %76 : vector<16x4xf32>
      %cst_94 = arith.constant 0.000000e+00 : f32
      %78 = vector.broadcast %cst_94 : f32 to vector<16x4xf32>
      %79 = arith.maximumf %77, %78 : vector<16x4xf32>
      %80 = vector.shape_cast %79 : vector<16x4xf32> to vector<1x1x16x4xf32>
      %81 = arith.truncf %80 : vector<1x1x16x4xf32> to vector<1x1x16x4xbf16>
      %c0_95 = arith.constant 0 : index
      %c0_96 = arith.constant 0 : index
      %c1_97 = arith.constant 1 : index
      %c0_98 = arith.constant 0 : index
      %82 = vector.load %arg12[%c0_95, %c0_96, %c1_97, %c0_98] : memref<1x10x18x4xbf16, #tpu.memory_space<vmem>>, vector<1x1x16x4xbf16>
      tpu.vector_store %arg12[%c0_95, %c0_96, %c1_97, %c0_98], %81 {strides = array<i32>} : memref<1x10x18x4xbf16, #tpu.memory_space<vmem>>, vector<1x1x16x4xbf16>,
    } else {
    }
    %c1_i32 = arith.constant 1 : i32
    %22 = arith.cmpi eq, %arg1, %c1_i32 : i32
    %23 = arith.extui %22 : i1 to i32
    %c0_i32_22 = arith.constant 0 : i32
    %24 = arith.cmpi ne, %23, %c0_i32_22 : i32
    scf.if %24 {
      %cst_89 = arith.constant 0.000000e+00 : bf16
      %72 = vector.broadcast %cst_89 : bf16 to vector<1x1x16x4xbf16>
      %c0_90 = arith.constant 0 : index
      %c9 = arith.constant 9 : index
      %c1_91 = arith.constant 1 : index
      %c0_92 = arith.constant 0 : index
      %73 = vector.load %arg12[%c0_90, %c9, %c1_91, %c0_92] : memref<1x10x18x4xbf16, #tpu.memory_space<vmem>>, vector<1x1x16x4xbf16>
      tpu.vector_store %arg12[%c0_90, %c9, %c1_91, %c0_92], %72 {strides = array<i32>} : memref<1x10x18x4xbf16, #tpu.memory_space<vmem>>, vector<1x1x16x4xbf16>,
    } else {
    }
    %c1_i32_23 = arith.constant 1 : i32
    %25 = arith.cmpi slt, %arg1, %c1_i32_23 : i32
    %26 = arith.extui %25 : i1 to i32
    %c0_i32_24 = arith.constant 0 : i32
    %27 = arith.cmpi ne, %26, %c0_i32_24 : i32
    scf.if %27 {
      %c0_89 = arith.constant 0 : index
      %c0_90 = arith.constant 0 : index
      %c0_91 = arith.constant 0 : index
      %c0_92 = arith.constant 0 : index
      %72 = vector.load %arg4[%c0_89, %c0_90, %c0_91, %c0_92] : memref<1x1x16x16xf32, #tpu.memory_space<vmem>>, vector<1x1x16x16xf32>
      %73 = vector.shape_cast %72 : vector<1x1x16x16xf32> to vector<16x16xf32>
      %74 = arith.truncf %73 : vector<16x16xf32> to vector<16x16xbf16>
      %cst_93 = arith.constant dense<0.000000e+00> : vector<16x4xf32>
      %75 = tpu.matmul %74, %0, %cst_93 {dimension_numbers = #tpu.dot_dimension_numbers<[1], [0], [0], [1], [0, 0, 1, 1], [], []>} : vector<16x16xbf16>, vector<16x4xbf16>, vector<16x4xf32> -> vector<16x4xf32>
      %76 = vector.broadcast %1 : vector<1x4xf32> to vector<16x4xf32>
      %77 = arith.addf %75, %76 : vector<16x4xf32>
      %cst_94 = arith.constant 0.000000e+00 : f32
      %78 = vector.broadcast %cst_94 : f32 to vector<16x4xf32>
      %79 = arith.maximumf %77, %78 : vector<16x4xf32>
      %80 = vector.shape_cast %79 : vector<16x4xf32> to vector<1x1x16x4xf32>
      %81 = arith.truncf %80 : vector<1x1x16x4xf32> to vector<1x1x16x4xbf16>
      %c0_95 = arith.constant 0 : index
      %c9 = arith.constant 9 : index
      %c1_96 = arith.constant 1 : index
      %c0_97 = arith.constant 0 : index
      %82 = vector.load %arg12[%c0_95, %c9, %c1_96, %c0_97] : memref<1x10x18x4xbf16, #tpu.memory_space<vmem>>, vector<1x1x16x4xbf16>
      tpu.vector_store %arg12[%c0_95, %c9, %c1_96, %c0_97], %81 {strides = array<i32>} : memref<1x10x18x4xbf16, #tpu.memory_space<vmem>>, vector<1x1x16x4xbf16>,
    } else {
    }
    %c0_25 = arith.constant 0 : index
    %c0_26 = arith.constant 0 : index
    %c0_27 = arith.constant 0 : index
    %c0_28 = arith.constant 0 : index
    %28 = vector.load %arg12[%c0_25, %c0_26, %c0_27, %c0_28] : memref<1x10x18x4xbf16, #tpu.memory_space<vmem>>, vector<1x8x16x4xbf16>
    %c0_29 = arith.constant 0 : index
    %c0_30 = arith.constant 0 : index
    %c1_31 = arith.constant 1 : index
    %c0_32 = arith.constant 0 : index
    %29 = vector.load %arg12[%c0_29, %c0_30, %c1_31, %c0_32] : memref<1x10x18x4xbf16, #tpu.memory_space<vmem>>, vector<1x8x16x4xbf16>
    %c0_33 = arith.constant 0 : index
    %c0_34 = arith.constant 0 : index
    %c2 = arith.constant 2 : index
    %c0_35 = arith.constant 0 : index
    %30 = vector.load %arg12[%c0_33, %c0_34, %c2, %c0_35] : memref<1x10x18x4xbf16, #tpu.memory_space<vmem>>, vector<1x8x16x4xbf16>
    %31 = tpu.concatenate %28, %29, %30 in 3 : vector<1x8x16x4xbf16>, vector<1x8x16x4xbf16>, vector<1x8x16x4xbf16> -> vector<1x8x16x12xbf16>
    %32 = vector.shape_cast %31 : vector<1x8x16x12xbf16> to vector<128x12xbf16>
    %c0_36 = arith.constant 0 : index
    %c0_37 = arith.constant 0 : index
    %c0_38 = arith.constant 0 : index
    %33 = vector.load %arg7[%c0_36, %c0_37, %c0_38] : memref<3x12x4xbf16, #tpu.memory_space<vmem>>, vector<1x12x4xbf16>
    %34 = vector.shape_cast %33 : vector<1x12x4xbf16> to vector<12x4xbf16>
    %cst_39 = arith.constant dense<0.000000e+00> : vector<128x4xf32>
    %35 = tpu.matmul %32, %34, %cst_39 {dimension_numbers = #tpu.dot_dimension_numbers<[1], [0], [0], [1], [0, 0, 1, 1], [], []>} : vector<128x12xbf16>, vector<12x4xbf16>, vector<128x4xf32> -> vector<128x4xf32>
    %c0_40 = arith.constant 0 : index
    %c1_41 = arith.constant 1 : index
    %c0_42 = arith.constant 0 : index
    %c0_43 = arith.constant 0 : index
    %36 = vector.load %arg12[%c0_40, %c1_41, %c0_42, %c0_43] : memref<1x10x18x4xbf16, #tpu.memory_space<vmem>>, vector<1x8x16x4xbf16>
    %c0_44 = arith.constant 0 : index
    %c1_45 = arith.constant 1 : index
    %c1_46 = arith.constant 1 : index
    %c0_47 = arith.constant 0 : index
    %37 = vector.load %arg12[%c0_44, %c1_45, %c1_46, %c0_47] : memref<1x10x18x4xbf16, #tpu.memory_space<vmem>>, vector<1x8x16x4xbf16>
    %c0_48 = arith.constant 0 : index
    %c1_49 = arith.constant 1 : index
    %c2_50 = arith.constant 2 : index
    %c0_51 = arith.constant 0 : index
    %38 = vector.load %arg12[%c0_48, %c1_49, %c2_50, %c0_51] : memref<1x10x18x4xbf16, #tpu.memory_space<vmem>>, vector<1x8x16x4xbf16>
    %39 = tpu.concatenate %36, %37, %38 in 3 : vector<1x8x16x4xbf16>, vector<1x8x16x4xbf16>, vector<1x8x16x4xbf16> -> vector<1x8x16x12xbf16>
    %40 = vector.shape_cast %39 : vector<1x8x16x12xbf16> to vector<128x12xbf16>
    %c1_52 = arith.constant 1 : index
    %c0_53 = arith.constant 0 : index
    %c0_54 = arith.constant 0 : index
    %41 = vector.load %arg7[%c1_52, %c0_53, %c0_54] : memref<3x12x4xbf16, #tpu.memory_space<vmem>>, vector<1x12x4xbf16>
    %42 = vector.shape_cast %41 : vector<1x12x4xbf16> to vector<12x4xbf16>
    %cst_55 = arith.constant dense<0.000000e+00> : vector<128x4xf32>
    %43 = tpu.matmul %40, %42, %cst_55 {dimension_numbers = #tpu.dot_dimension_numbers<[1], [0], [0], [1], [0, 0, 1, 1], [], []>} : vector<128x12xbf16>, vector<12x4xbf16>, vector<128x4xf32> -> vector<128x4xf32>
    %44 = arith.addf %35, %43 : vector<128x4xf32>
    %c0_56 = arith.constant 0 : index
    %c2_57 = arith.constant 2 : index
    %c0_58 = arith.constant 0 : index
    %c0_59 = arith.constant 0 : index
    %45 = vector.load %arg12[%c0_56, %c2_57, %c0_58, %c0_59] : memref<1x10x18x4xbf16, #tpu.memory_space<vmem>>, vector<1x8x16x4xbf16>
    %c0_60 = arith.constant 0 : index
    %c2_61 = arith.constant 2 : index
    %c1_62 = arith.constant 1 : index
    %c0_63 = arith.constant 0 : index
    %46 = vector.load %arg12[%c0_60, %c2_61, %c1_62, %c0_63] : memref<1x10x18x4xbf16, #tpu.memory_space<vmem>>, vector<1x8x16x4xbf16>
    %c0_64 = arith.constant 0 : index
    %c2_65 = arith.constant 2 : index
    %c2_66 = arith.constant 2 : index
    %c0_67 = arith.constant 0 : index
    %47 = vector.load %arg12[%c0_64, %c2_65, %c2_66, %c0_67] : memref<1x10x18x4xbf16, #tpu.memory_space<vmem>>, vector<1x8x16x4xbf16>
    %48 = tpu.concatenate %45, %46, %47 in 3 : vector<1x8x16x4xbf16>, vector<1x8x16x4xbf16>, vector<1x8x16x4xbf16> -> vector<1x8x16x12xbf16>
    %49 = vector.shape_cast %48 : vector<1x8x16x12xbf16> to vector<128x12xbf16>
    %c2_68 = arith.constant 2 : index
    %c0_69 = arith.constant 0 : index
    %c0_70 = arith.constant 0 : index
    %50 = vector.load %arg7[%c2_68, %c0_69, %c0_70] : memref<3x12x4xbf16, #tpu.memory_space<vmem>>, vector<1x12x4xbf16>
    %51 = vector.shape_cast %50 : vector<1x12x4xbf16> to vector<12x4xbf16>
    %cst_71 = arith.constant dense<0.000000e+00> : vector<128x4xf32>
    %52 = tpu.matmul %49, %51, %cst_71 {dimension_numbers = #tpu.dot_dimension_numbers<[1], [0], [0], [1], [0, 0, 1, 1], [], []>} : vector<128x12xbf16>, vector<12x4xbf16>, vector<128x4xf32> -> vector<128x4xf32>
    %53 = arith.addf %44, %52 : vector<128x4xf32>
    %c0_72 = arith.constant 0 : index
    %c0_73 = arith.constant 0 : index
    %54 = vector.load %arg8[%c0_72, %c0_73] : memref<1x4xf32, #tpu.memory_space<vmem>>, vector<1x4xf32>
    %55 = vector.broadcast %54 : vector<1x4xf32> to vector<128x4xf32>
    %56 = arith.addf %53, %55 : vector<128x4xf32>
    %cst_74 = arith.constant 0.000000e+00 : f32
    %57 = vector.broadcast %cst_74 : f32 to vector<128x4xf32>
    %58 = arith.maximumf %56, %57 : vector<128x4xf32>
    %59 = arith.truncf %58 : vector<128x4xf32> to vector<128x4xbf16>
    %c0_75 = arith.constant 0 : index
    %c0_76 = arith.constant 0 : index
    %60 = vector.load %arg9[%c0_75, %c0_76] : memref<4x16xbf16, #tpu.memory_space<vmem>>, vector<4x16xbf16>
    %cst_77 = arith.constant dense<0.000000e+00> : vector<128x16xf32>
    %61 = tpu.matmul %59, %60, %cst_77 {dimension_numbers = #tpu.dot_dimension_numbers<[1], [0], [0], [1], [0, 0, 1, 1], [], []>} : vector<128x4xbf16>, vector<4x16xbf16>, vector<128x16xf32> -> vector<128x16xf32>
    %c0_78 = arith.constant 0 : index
    %c0_79 = arith.constant 0 : index
    %62 = vector.load %arg10[%c0_78, %c0_79] : memref<1x16xf32, #tpu.memory_space<vmem>>, vector<1x16xf32>
    %63 = vector.broadcast %62 : vector<1x16xf32> to vector<128x16xf32>
    %64 = arith.addf %61, %63 : vector<128x16xf32>
    %c0_80 = arith.constant 0 : index
    %c0_81 = arith.constant 0 : index
    %c0_82 = arith.constant 0 : index
    %c0_83 = arith.constant 0 : index
    %65 = vector.load %arg2[%c0_80, %c0_81, %c0_82, %c0_83] : memref<1x8x16x16xf32, #tpu.memory_space<vmem>>, vector<1x8x16x16xf32>
    %66 = vector.shape_cast %65 : vector<1x8x16x16xf32> to vector<128x16xf32>
    %67 = arith.addf %64, %66 : vector<128x16xf32>
    %cst_84 = arith.constant 0.000000e+00 : f32
    %68 = vector.broadcast %cst_84 : f32 to vector<128x16xf32>
    %69 = arith.maximumf %67, %68 : vector<128x16xf32>
    %70 = vector.shape_cast %69 : vector<128x16xf32> to vector<1x8x16x16xf32>
    %c0_85 = arith.constant 0 : index
    %c0_86 = arith.constant 0 : index
    %c0_87 = arith.constant 0 : index
    %c0_88 = arith.constant 0 : index
    %71 = vector.load %arg11[%c0_85, %c0_86, %c0_87, %c0_88] : memref<1x8x16x16xf32, #tpu.memory_space<vmem>>, vector<1x8x16x16xf32>
    tpu.vector_store %arg11[%c0_85, %c0_86, %c0_87, %c0_88], %70 {strides = array<i32>} : memref<1x8x16x16xf32, #tpu.memory_space<vmem>>, vector<1x8x16x16xf32>,
    return
  }
  func.func @transform_0(%arg0: i32, %arg1: i32) -> (i32, i32, i32, i32) {
    %c0_i32 = arith.constant 0 : i32
    %c0_i32_0 = arith.constant 0 : i32
    %c0_i32_1 = arith.constant 0 : i32
    return %arg0, %arg1, %c0_i32, %c0_i32_0 : i32, i32, i32, i32
  }
  func.func @transform_1(%arg0: i32, %arg1: i32) -> (i32, i32, i32, i32) {
    %c8_i32 = arith.constant 8 : i32
    %0 = arith.muli %arg1, %c8_i32 : i32
    %c1_i32 = arith.constant 1 : i32
    %1 = arith.subi %0, %c1_i32 : i32
    %c0_i32 = arith.constant 0 : i32
    %2 = arith.maxsi %1, %c0_i32 : i32
    %c0_i32_0 = arith.constant 0 : i32
    %c0_i32_1 = arith.constant 0 : i32
    %c0_i32_2 = arith.constant 0 : i32
    return %arg0, %2, %c0_i32_0, %c0_i32_1 : i32, i32, i32, i32
  }
  func.func @transform_2(%arg0: i32, %arg1: i32) -> (i32, i32, i32, i32) {
    %c1_i32 = arith.constant 1 : i32
    %0 = arith.addi %arg1, %c1_i32 : i32
    %c8_i32 = arith.constant 8 : i32
    %1 = arith.muli %0, %c8_i32 : i32
    %c15_i32 = arith.constant 15 : i32
    %2 = arith.minsi %1, %c15_i32 : i32
    %c0_i32 = arith.constant 0 : i32
    %c0_i32_0 = arith.constant 0 : i32
    %c0_i32_1 = arith.constant 0 : i32
    return %arg0, %2, %c0_i32, %c0_i32_0 : i32, i32, i32, i32
  }
  func.func @transform_3(%arg0: i32, %arg1: i32) -> (i32, i32) {
    %c0_i32 = arith.constant 0 : i32
    %c0_i32_0 = arith.constant 0 : i32
    %c0_i32_1 = arith.constant 0 : i32
    return %c0_i32, %c0_i32_0 : i32, i32
  }
  func.func @transform_4(%arg0: i32, %arg1: i32) -> (i32, i32) {
    %c0_i32 = arith.constant 0 : i32
    %c0_i32_0 = arith.constant 0 : i32
    %c0_i32_1 = arith.constant 0 : i32
    return %c0_i32, %c0_i32_0 : i32, i32
  }
  func.func @transform_5(%arg0: i32, %arg1: i32) -> (i32, i32, i32) {
    %c0_i32 = arith.constant 0 : i32
    %c0_i32_0 = arith.constant 0 : i32
    %c0_i32_1 = arith.constant 0 : i32
    %c0_i32_2 = arith.constant 0 : i32
    return %c0_i32, %c0_i32_0, %c0_i32_1 : i32, i32, i32
  }
  func.func @transform_6(%arg0: i32, %arg1: i32) -> (i32, i32) {
    %c0_i32 = arith.constant 0 : i32
    %c0_i32_0 = arith.constant 0 : i32
    %c0_i32_1 = arith.constant 0 : i32
    return %c0_i32, %c0_i32_0 : i32, i32
  }
  func.func @transform_7(%arg0: i32, %arg1: i32) -> (i32, i32) {
    %c0_i32 = arith.constant 0 : i32
    %c0_i32_0 = arith.constant 0 : i32
    %c0_i32_1 = arith.constant 0 : i32
    return %c0_i32, %c0_i32_0 : i32, i32
  }
  func.func @transform_8(%arg0: i32, %arg1: i32) -> (i32, i32) {
    %c0_i32 = arith.constant 0 : i32
    %c0_i32_0 = arith.constant 0 : i32
    %c0_i32_1 = arith.constant 0 : i32
    return %c0_i32, %c0_i32_0 : i32, i32
  }
  func.func @transform_9(%arg0: i32, %arg1: i32) -> (i32, i32, i32, i32) {
    %c0_i32 = arith.constant 0 : i32
    %c0_i32_0 = arith.constant 0 : i32
    %c0_i32_1 = arith.constant 0 : i32
    return %arg0, %arg1, %c0_i32, %c0_i32_0 : i32, i32, i32, i32
  }
}

</mosaic_0001>

<llo_original>
// kernel: tpu_custom_call.1
$region0: #{tpu_custom_call.1}
  #allocation0 [shape = 'u32[]', space=smem, size = 0x4, offset = 0x4, fixed_abs, tag = 'smem constant byte address 0x4 - core index']
  #allocation1 [shape = 'u32[144,128]{1,0:T(1,128)}', space=vmem, size = 0x12000, scoped, tag = 'internal scratch']
  #allocation2 [shape = 'bf16[1,10,18,4]{3,2,1,0:T(8,128)(2,1)}', space=vmem, size = 0xf000, scoped, tag = 'scratch operand']
  %s0 = inlined_call_operand.hbm [shape: f32[2,16,16,16], index: 0, kind: input, shape index: {}]
  %s1 = inlined_call_operand.hbm [shape: f32[2,16,16,16], index: 1, kind: input, shape index: {}]
  %s2 = inlined_call_operand.hbm [shape: f32[2,16,16,16], index: 2, kind: input, shape index: {}]
  %s3 = inlined_call_operand.vmem [shape: bf16[16,4], index: 3, kind: input, shape index: {}]
  %s4 = inlined_call_operand.vmem [shape: f32[1,4], index: 4, kind: input, shape index: {}]
  %s5 = inlined_call_operand.vmem [shape: bf16[3,12,4], index: 5, kind: input, shape index: {}]
  %s6 = inlined_call_operand.vmem [shape: f32[1,4], index: 6, kind: input, shape index: {}]
  %s7 = inlined_call_operand.vmem [shape: bf16[4,16], index: 7, kind: input, shape index: {}]
  %s8 = inlined_call_operand.vmem [shape: f32[1,16], index: 8, kind: input, shape index: {}]
  %s9 = inlined_call_operand.hbm [shape: f32[2,16,16,16], index: 9, kind: output, shape index: {}]
  %s10 = sld [smem:[#allocation0]]
  $region97: #{tpu_custom_call.1} parent=0
    _
  %s12 = ssub.s32 1, %s10
  %s13 = scalar_select 0, %s12, %s10
  $region1: #{tpu_custom_call.1} parent=0
    #allocation3 [shape = 'u8[131072]{0}', space=vmem, size = 0x20000, scoped, tag = 'input window, operand 0']
    #allocation4 [shape = 's32[2]{0}', space=sflag, size = 0x8, scoped, tag = 'scoped memory for tpu_custom_call.1']
    #allocation5 [shape = 's32[2]{0}', space=sflag, size = 0x8, scoped, tag = 'scoped memory for tpu_custom_call.1']
    #allocation6 [shape = 'u8[16384]{0}', space=vmem, size = 0x4000, scoped, tag = 'input window, operand 1']
    #allocation7 [shape = 's32[2]{0}', space=sflag, size = 0x8, scoped, tag = 'scoped memory for tpu_custom_call.1']
    #allocation8 [shape = 'u8[16384]{0}', space=vmem, size = 0x4000, scoped, tag = 'input window, operand 2']
    #allocation9 [shape = 'u8[131072]{0}', space=vmem, size = 0x20000, scoped, tag = 'output window, operand 0']
    %14 = vsyncpa [#allocation4], 0
    %s15 = scalar_lea.sflag [#allocation4], 1
    %16 = vsyncpa %s15, 0
    %17 = vsyncpa [#allocation7], 0
    %s18 = scalar_lea.sflag [#allocation7], 1
    %19 = vsyncpa %s18, 0
    %20 = vsyncpa [#allocation5], 0
    %s21 = scalar_lea.sflag [#allocation5], 1
    %22 = vsyncpa %s21, 0
    loop: start=0, step=1, limit=6
    $region2: #{tpu_custom_call.1} parent=1 // loop_pre_header
      _
    $region3: #{tpu_custom_call.1} parent=1 // loop_header
      %s24 = sphi 0, %s28
      %p25 = scmp.ge.s32.totalorder %s24, 6
      %s31 = sphi 0, %s43
      %s32 = sphi 0, %s39
      %s33 = sphi 0, %s31
      %s34 = sphi 0, %s32
      %s35 = sphi 0, %s33
      %s36 = sphi 0, %s34
      %s48 = sphi 0, %s50
      %s51 = sphi 0, %s48
      %s52 = sphi 0, %s51
      %s68 = sphi 0, %s52
      %s84 = sphi 0, %s86
      %s87 = sphi 0, %s84
      %s88 = sphi 0, %s87
      %s104 = sphi 0, %s88
      %s120 = sphi 0, %s122
      %s123 = sphi 0, %s120
      %s124 = sphi 0, %s123
      %s140 = sphi 0, %s124
      %s144 = sphi 0, %s144
      %s146 = sphi 0, %s144
      %s147 = sphi 0, %s146
      %s161 = sphi 0, %s147
      %s165 = sphi 0, %s165
      %s167 = sphi 0, %s165
      %s168 = sphi 0, %s167
      %s182 = sphi 0, %s168
      %s186 = sphi 0, %s186
      %s188 = sphi 0, %s186
      %s189 = sphi 0, %s188
      %s203 = sphi 0, %s189
      %s207 = sphi 0, %s207
      %s209 = sphi 0, %s207
      %s210 = sphi 0, %s209
      %s224 = sphi 0, %s210
      %s228 = sphi 0, %s228
      %s230 = sphi 0, %s228
      %s231 = sphi 0, %s230
      %s245 = sphi 0, %s231
      %s249 = sphi 0, %s249
      %s251 = sphi 0, %s249
      %s252 = sphi 0, %s251
      %s266 = sphi 0, %s252
      %s274 = sphi 0, %s276
      %s277 = sphi 0, %s274
      %s278 = sphi 0, %s277
      %s294 = sphi 0, %s278
    $region4: #{tpu_custom_call.1} parent=1 // loop_header_branch
      %27 = sbr.rel (%p25) target = $region8
    $region5: #{tpu_custom_call.1} parent=1 // loop_body
      %s29 = ssub.s32 %s24, 1
      %s30 = ssub.s32 %s24, 2
      %s37 = sadd.s32 1, %s32
      %p38 = scmp.ge.s32.totalorder %s37, 2
      %s39 = scalar_select %p38, 0, %s37
      %s40 = sadd.s32 1, %s31
      %s41 = scalar_select %p38, %s40, %s31
      %p42 = scmp.ge.s32.totalorder %s41, 2
      %s43 = scalar_select %p42, 0, %s41
      %s44 = ssub.s32 %s31, %s43
      %s45 = ssub.s32 %s32, %s39
      %s46 = sor.u32 %s44, %s45
      %p47 = scmp.eq.s32.totalorder %s46, 0
      %s49 = sadd.s32 %s48, 1
      %s50 = scalar_select %p47, %s48, %s49
      %p53 = pneg %p47
      %p54 = scmp.eq.s32.totalorder %s24, 3
      %p55 = por %p53, %p54
      %p56 = scmp.ne.s32.totalorder %s48, %s51
      %p57 = scmp.eq.s32.totalorder %s24, 0
      %p58 = por %p56, %p57
      %p59 = scmp.ne.s32.totalorder %s48, %s51
      %p60 = scmp.eq.s32.totalorder %s29, 3
      %p61 = por %p59, %p60
      %p62 = scmp.ne.s32.totalorder %s51, %s52
      %p63 = scmp.eq.s32.totalorder %s29, 0
      %p64 = por %p62, %p63
      %p65 = scmp.ne.s32.totalorder %s51, %s52
      %p66 = scmp.eq.s32.totalorder %s30, 3
      %p67 = por %p65, %p66
      %p69 = scmp.ne.s32.totalorder %s52, %s68
      %p70 = scmp.eq.s32.totalorder %s30, 0
      %p71 = por %p69, %p70
      %s72 = smul.u32 %s32, 8
      %s73 = ssub.s32 %s72, 1
      %p74 = scmp.gt.s32.totalorder %s73, 0
      %s75 = scalar_select %p74, %s73, 0
      %s76 = smul.u32 %s39, 8
      %s77 = ssub.s32 %s76, 1
      %p78 = scmp.gt.s32.totalorder %s77, 0
      %s79 = scalar_select %p78, %s77, 0
      %s80 = ssub.s32 %s31, %s43
      %s81 = ssub.s32 %s75, %s79
      %s82 = sor.u32 %s80, %s81
      %p83 = scmp.eq.s32.totalorder %s82, 0
      %s85 = sadd.s32 %s84, 1
      %s86 = scalar_select %p83, %s84, %s85
      %p89 = pneg %p83
      %p90 = scmp.eq.s32.totalorder %s24, 3
      %p91 = por %p89, %p90
      %p92 = scmp.ne.s32.totalorder %s84, %s87
      %p93 = scmp.eq.s32.totalorder %s24, 0
      %p94 = por %p92, %p93
      %p95 = scmp.ne.s32.totalorder %s84, %s87
      %p96 = scmp.eq.s32.totalorder %s29, 3
      %p97 = por %p95, %p96
      %p98 = scmp.ne.s32.totalorder %s87, %s88
      %p99 = scmp.eq.s32.totalorder %s29, 0
      %p100 = por %p98, %p99
      %p101 = scmp.ne.s32.totalorder %s87, %s88
      %p102 = scmp.eq.s32.totalorder %s30, 3
      %p103 = por %p101, %p102
      %p105 = scmp.ne.s32.totalorder %s88, %s104
      %p106 = scmp.eq.s32.totalorder %s30, 0
      %p107 = por %p105, %p106
      %s108 = sadd.s32 %s32, 1
      %s109 = smul.u32 %s108, 8
      %p110 = scmp.lt.s32.totalorder %s109, 15
      %s111 = scalar_select %p110, %s109, 15
      %s112 = sadd.s32 %s39, 1
      %s113 = smul.u32 %s112, 8
      %p114 = scmp.lt.s32.totalorder %s113, 15
      %s115 = scalar_select %p114, %s113, 15
      %s116 = ssub.s32 %s31, %s43
      %s117 = ssub.s32 %s111, %s115
      %s118 = sor.u32 %s116, %s117
      %p119 = scmp.eq.s32.totalorder %s118, 0
      %s121 = sadd.s32 %s120, 1
      %s122 = scalar_select %p119, %s120, %s121
      %p125 = pneg %p119
      %p126 = scmp.eq.s32.totalorder %s24, 3
      %p127 = por %p125, %p126
      %p128 = scmp.ne.s32.totalorder %s120, %s123
      %p129 = scmp.eq.s32.totalorder %s24, 0
      %p130 = por %p128, %p129
      %p131 = scmp.ne.s32.totalorder %s120, %s123
      %p132 = scmp.eq.s32.totalorder %s29, 3
      %p133 = por %p131, %p132
      %p134 = scmp.ne.s32.totalorder %s123, %s124
      %p135 = scmp.eq.s32.totalorder %s29, 0
      %p136 = por %p134, %p135
      %p137 = scmp.ne.s32.totalorder %s123, %s124
      %p138 = scmp.eq.s32.totalorder %s30, 3
      %p139 = por %p137, %p138
      %p141 = scmp.ne.s32.totalorder %s124, %s140
      %p142 = scmp.eq.s32.totalorder %s30, 0
      %p143 = por %p141, %p142
      %s145 = sadd.s32 %s144, 1
      %p148 = scmp.eq.s32.totalorder %s24, 3
      %p149 = scmp.ne.s32.totalorder %s144, %s146
      %p150 = scmp.eq.s32.totalorder %s24, 0
      %p151 = por %p149, %p150
      %p152 = scmp.ne.s32.totalorder %s144, %s146
      %p153 = scmp.eq.s32.totalorder %s29, 3
      %p154 = por %p152, %p153
      %p155 = scmp.ne.s32.totalorder %s146, %s147
      %p156 = scmp.eq.s32.totalorder %s29, 0
      %p157 = por %p155, %p156
      %p158 = scmp.ne.s32.totalorder %s146, %s147
      %p159 = scmp.eq.s32.totalorder %s30, 3
      %p160 = por %p158, %p159
      %p162 = scmp.ne.s32.totalorder %s147, %s161
      %p163 = scmp.eq.s32.totalorder %s30, 0
      %p164 = por %p162, %p163
      %s166 = sadd.s32 %s165, 1
      %p169 = scmp.eq.s32.totalorder %s24, 3
      %p170 = scmp.ne.s32.totalorder %s165, %s167
      %p171 = scmp.eq.s32.totalorder %s24, 0
      %p172 = por %p170, %p171
      %p173 = scmp.ne.s32.totalorder %s165, %s167
      %p174 = scmp.eq.s32.totalorder %s29, 3
      %p175 = por %p173, %p174
      %p176 = scmp.ne.s32.totalorder %s167, %s168
      %p177 = scmp.eq.s32.totalorder %s29, 0
      %p178 = por %p176, %p177
      %p179 = scmp.ne.s32.totalorder %s167, %s168
      %p180 = scmp.eq.s32.totalorder %s30, 3
      %p181 = por %p179, %p180
      %p183 = scmp.ne.s32.totalorder %s168, %s182
      %p184 = scmp.eq.s32.totalorder %s30, 0
      %p185 = por %p183, %p184
      %s187 = sadd.s32 %s186, 1
      %p190 = scmp.eq.s32.totalorder %s24, 3
      %p191 = scmp.ne.s32.totalorder %s186, %s188
      %p192 = scmp.eq.s32.totalorder %s24, 0
      %p193 = por %p191, %p192
      %p194 = scmp.ne.s32.totalorder %s186, %s188
      %p195 = scmp.eq.s32.totalorder %s29, 3
      %p196 = por %p194, %p195
      %p197 = scmp.ne.s32.totalorder %s188, %s189
      %p198 = scmp.eq.s32.totalorder %s29, 0
      %p199 = por %p197, %p198
      %p200 = scmp.ne.s32.totalorder %s188, %s189
      %p201 = scmp.eq.s32.totalorder %s30, 3
      %p202 = por %p200, %p201
      %p204 = scmp.ne.s32.totalorder %s189, %s203
      %p205 = scmp.eq.s32.totalorder %s30, 0
      %p206 = por %p204, %p205
      %s208 = sadd.s32 %s207, 1
      %p211 = scmp.eq.s32.totalorder %s24, 3
      %p212 = scmp.ne.s32.totalorder %s207, %s209
      %p213 = scmp.eq.s32.totalorder %s24, 0
      %p214 = por %p212, %p213
      %p215 = scmp.ne.s32.totalorder %s207, %s209
      %p216 = scmp.eq.s32.totalorder %s29, 3
      %p217 = por %p215, %p216
      %p218 = scmp.ne.s32.totalorder %s209, %s210
      %p219 = scmp.eq.s32.totalorder %s29, 0
      %p220 = por %p218, %p219
      %p221 = scmp.ne.s32.totalorder %s209, %s210
      %p222 = scmp.eq.s32.totalorder %s30, 3
      %p223 = por %p221, %p222
      %p225 = scmp.ne.s32.totalorder %s210, %s224
      %p226 = scmp.eq.s32.totalorder %s30, 0
      %p227 = por %p225, %p226
      %s229 = sadd.s32 %s228, 1
      %p232 = scmp.eq.s32.totalorder %s24, 3
      %p233 = scmp.ne.s32.totalorder %s228, %s230
      %p234 = scmp.eq.s32.totalorder %s24, 0
      %p235 = por %p233, %p234
      %p236 = scmp.ne.s32.totalorder %s228, %s230
      %p237 = scmp.eq.s32.totalorder %s29, 3
      %p238 = por %p236, %p237
      %p239 = scmp.ne.s32.totalorder %s230, %s231
      %p240 = scmp.eq.s32.totalorder %s29, 0
      %p241 = por %p239, %p240
      %p242 = scmp.ne.s32.totalorder %s230, %s231
      %p243 = scmp.eq.s32.totalorder %s30, 3
      %p244 = por %p242, %p243
      %p246 = scmp.ne.s32.totalorder %s231, %s245
      %p247 = scmp.eq.s32.totalorder %s30, 0
      %p248 = por %p246, %p247
      %s250 = sadd.s32 %s249, 1
      %p253 = scmp.eq.s32.totalorder %s24, 3
      %p254 = scmp.ne.s32.totalorder %s249, %s251
      %p255 = scmp.eq.s32.totalorder %s24, 0
      %p256 = por %p254, %p255
      %p257 = scmp.ne.s32.totalorder %s249, %s251
      %p258 = scmp.eq.s32.totalorder %s29, 3
      %p259 = por %p257, %p258
      %p260 = scmp.ne.s32.totalorder %s251, %s252
      %p261 = scmp.eq.s32.totalorder %s29, 0
      %p262 = por %p260, %p261
      %p263 = scmp.ne.s32.totalorder %s251, %s252
      %p264 = scmp.eq.s32.totalorder %s30, 3
      %p265 = por %p263, %p264
      %p267 = scmp.ne.s32.totalorder %s252, %s266
      %p268 = scmp.eq.s32.totalorder %s30, 0
      %p269 = por %p267, %p268
      %s270 = ssub.s32 %s31, %s43
      %s271 = ssub.s32 %s32, %s39
      %s272 = sor.u32 %s270, %s271
      %p273 = scmp.eq.s32.totalorder %s272, 0
      %s275 = sadd.s32 %s274, 1
      %s276 = scalar_select %p273, %s274, %s275
      %p279 = pneg %p273
      %p280 = scmp.eq.s32.totalorder %s24, 3
      %p281 = por %p279, %p280
      %p282 = scmp.ne.s32.totalorder %s274, %s277
      %p283 = scmp.eq.s32.totalorder %s24, 0
      %p284 = por %p282, %p283
      %p285 = scmp.ne.s32.totalorder %s274, %s277
      %p286 = scmp.eq.s32.totalorder %s29, 3
      %p287 = por %p285, %p286
      %p288 = scmp.ne.s32.totalorder %s277, %s278
      %p289 = scmp.eq.s32.totalorder %s29, 0
      %p290 = por %p288, %p289
      %p291 = scmp.ne.s32.totalorder %s277, %s278
      %p292 = scmp.eq.s32.totalorder %s30, 3
      %p293 = por %p291, %p292
      %p295 = scmp.ne.s32.totalorder %s278, %s294
      %p296 = scmp.eq.s32.totalorder %s30, 0
      %p297 = por %p295, %p296
      %p298 = scmp.le.s32.totalorder 1, %s24
      %p299 = scmp.lt.s32.totalorder %s24, 5
      %p300 = pnand %p298, %p299
      %p301 = pneg %p300
      // Predicated region
      $region9: #{tpu_custom_call.1} parent=5 // pred_check
        _
      $region10: #{tpu_custom_call.1} parent=5 // pred_check_branch
        %303 = sbr.rel (%p300) target = $region12
      $region11: #{tpu_custom_call.1} parent=5 // pred_region
        %s304 = ssub.s32 %s24, 1
        // Predicated region
        $region13: #{tpu_custom_call.1} parent=11 // pred_check
          %p305 = pneg %p157
        $region14: #{tpu_custom_call.1} parent=11 // pred_check_branch
          %307 = sbr.rel (%p305) target = $region16
        $region15: #{tpu_custom_call.1} parent=11 // pred_region
          _
        $region16: #{tpu_custom_call.1} parent=11 // pred_fallthru
          _
        // Predicated region
        $region17: #{tpu_custom_call.1} parent=11 // pred_check
          %p308 = pneg %p178
        $region18: #{tpu_custom_call.1} parent=11 // pred_check_branch
          %310 = sbr.rel (%p308) target = $region20
        $region19: #{tpu_custom_call.1} parent=11 // pred_region
          _
        $region20: #{tpu_custom_call.1} parent=11 // pred_fallthru
          _
        // Predicated region
        $region21: #{tpu_custom_call.1} parent=11 // pred_check
          %p311 = pneg %p199
        $region22: #{tpu_custom_call.1} parent=11 // pred_check_branch
          %313 = sbr.rel (%p311) target = $region24
        $region23: #{tpu_custom_call.1} parent=11 // pred_region
          _
        $region24: #{tpu_custom_call.1} parent=11 // pred_fallthru
          _
        // Predicated region
        $region25: #{tpu_custom_call.1} parent=11 // pred_check
          %p314 = pneg %p220
        $region26: #{tpu_custom_call.1} parent=11 // pred_check_branch
          %316 = sbr.rel (%p314) target = $region28
        $region27: #{tpu_custom_call.1} parent=11 // pred_region
          _
        $region28: #{tpu_custom_call.1} parent=11 // pred_fallthru
          _
        // Predicated region
        $region29: #{tpu_custom_call.1} parent=11 // pred_check
          %p317 = pneg %p241
        $region30: #{tpu_custom_call.1} parent=11 // pred_check_branch
          %319 = sbr.rel (%p317) target = $region32
        $region31: #{tpu_custom_call.1} parent=11 // pred_region
          _
        $region32: #{tpu_custom_call.1} parent=11 // pred_fallthru
          _
        // Predicated region
        $region33: #{tpu_custom_call.1} parent=11 // pred_check
          %p320 = pneg %p262
        $region34: #{tpu_custom_call.1} parent=11 // pred_check_branch
          %322 = sbr.rel (%p320) target = $region36
        $region35: #{tpu_custom_call.1} parent=11 // pred_region
          _
        $region36: #{tpu_custom_call.1} parent=11 // pred_fallthru
          _
      $region12: #{tpu_custom_call.1} parent=5 // pred_fallthru
        _
      %p323 = scmp.lt.s32.totalorder %s24, 4
      // Predicated region
      $region37: #{tpu_custom_call.1} parent=5 // pred_check
        %p324 = pneg %p323
      $region38: #{tpu_custom_call.1} parent=5 // pred_check_branch
        %326 = sbr.rel (%p324) target = $region40
      $region39: #{tpu_custom_call.1} parent=5 // pred_region
        // Predicated region
        $region41: #{tpu_custom_call.1} parent=39 // pred_check
          %p327 = pneg %p58
        $region42: #{tpu_custom_call.1} parent=39 // pred_check_branch
          %329 = sbr.rel (%p327) target = $region44
        $region43: #{tpu_custom_call.1} parent=39 // pred_region
          %s330 = sand.u32 %s48, 1
          %s331 = scalar_lea.sflag [#allocation4], %s330
          %s332 = sand.u32 %s48, 1
          %s333 = smul.addr %s332, 128
          %s334 = scalar_lea.vmem [#allocation3], %s333
          %s335 = smul.u32 8, %s32
          %s337 = ssub.s32 2048, 2048
          %338 = vsyncadd %s331, %s337
          %s339 = smul.addr %s335, 2
          %s340 = smul.addr %s31, 32
          %s341 = sadd.s32 %s339, %s340
          %s342 = smul.addr %s341, 128
          %s343 = scalar_lea.hbm %s0, %s342
          %s344 = sshll.u32 %s334, 4
          %s345 = int_to_ptr.vmem [resolvable:$true] %s344
          %350 = dma.hbm_to_vmem [thread:$0]  %s343, 2048, %s345, %s331, 128, 128, 8
        $region44: #{tpu_custom_call.1} parent=39 // pred_fallthru
          _
        // Predicated region
        $region45: #{tpu_custom_call.1} parent=39 // pred_check
          %p351 = pneg %p94
        $region46: #{tpu_custom_call.1} parent=39 // pred_check_branch
          %353 = sbr.rel (%p351) target = $region48
        $region47: #{tpu_custom_call.1} parent=39 // pred_region
          %s354 = sand.u32 %s24, 1
          %s355 = scalar_lea.sflag [#allocation7], %s354
          %s356 = sand.u32 %s84, 1
          %s357 = smul.addr %s356, 16
          %s358 = scalar_lea.vmem [#allocation6], %s357
          %s359 = smul.u32 %s32, 8
          %s360 = ssub.s32 %s359, 1
          %p361 = scmp.gt.s32.totalorder %s360, 0
          %s362 = scalar_select %p361, %s360, 0
          %s364 = ssub.s32 256, 256
          %365 = vsyncadd %s355, %s364
          %s366 = smul.addr %s362, 2
          %s367 = smul.addr %s31, 32
          %s368 = sadd.s32 %s366, %s367
          %s369 = smul.addr %s368, 128
          %s370 = scalar_lea.hbm %s1, %s369
          %s371 = sshll.u32 %s358, 4
          %s372 = int_to_ptr.vmem [resolvable:$true] %s371
          %377 = dma.hbm_to_vmem [thread:$0]  %s370, 256, %s372, %s355, 128, 128, 8
        $region48: #{tpu_custom_call.1} parent=39 // pred_fallthru
          _
        // Predicated region
        $region49: #{tpu_custom_call.1} parent=39 // pred_check
          %p378 = pneg %p130
        $region50: #{tpu_custom_call.1} parent=39 // pred_check_branch
          %380 = sbr.rel (%p378) target = $region52
        $region51: #{tpu_custom_call.1} parent=39 // pred_region
          %s381 = sand.u32 %s24, 1
          %s382 = scalar_lea.sflag [#allocation7], %s381
          %s383 = sand.u32 %s120, 1
          %s384 = smul.addr %s383, 16
          %s385 = scalar_lea.vmem [#allocation8], %s384
          %s386 = sadd.s32 %s32, 1
          %s387 = smul.u32 %s386, 8
          %p388 = scmp.lt.s32.totalorder %s387, 15
          %s389 = scalar_select %p388, %s387, 15
          %s391 = ssub.s32 256, 256
          %392 = vsyncadd %s382, %s391
          %s393 = smul.addr %s389, 2
          %s394 = smul.addr %s31, 32
          %s395 = sadd.s32 %s393, %s394
          %s396 = smul.addr %s395, 128
          %s397 = scalar_lea.hbm %s2, %s396
          %s398 = sshll.u32 %s385, 4
          %s399 = int_to_ptr.vmem [resolvable:$true] %s398
          %404 = dma.hbm_to_vmem [thread:$0]  %s397, 256, %s399, %s382, 128, 128, 8
        $region52: #{tpu_custom_call.1} parent=39 // pred_fallthru
          _
      $region40: #{tpu_custom_call.1} parent=5 // pred_fallthru
        _
      %p405 = scmp.le.s32.totalorder 1, %s24
      %p406 = scmp.lt.s32.totalorder %s24, 5
      %p407 = pnand %p405, %p406
      %p408 = pneg %p407
      // Predicated region
      $region53: #{tpu_custom_call.1} parent=5 // pred_check
        _
      $region54: #{tpu_custom_call.1} parent=5 // pred_check_branch
        %410 = sbr.rel (%p407) target = $region56
      $region55: #{tpu_custom_call.1} parent=5 // pred_region
        %s411 = ssub.s32 %s24, 1
        %s412 = sand.u32 %s51, 1
        %s413 = scalar_lea.sflag [#allocation4], %s412
        %s414 = sand.u32 %s51, 1
        %s415 = smul.addr %s414, 128
        %s416 = scalar_lea.vmem [#allocation3], %s415
        // Predicated region
        $region57: #{tpu_custom_call.1} parent=55 // pred_check
          %p417 = pneg %p64
        $region58: #{tpu_custom_call.1} parent=55 // pred_check_branch
          %419 = sbr.rel (%p417) target = $region60
        $region59: #{tpu_custom_call.1} parent=55 // pred_region
          %420 = dma.done %s413, 2048
        $region60: #{tpu_custom_call.1} parent=55 // pred_fallthru
          _
        %s421 = sand.u32 %s29, 1
        %s422 = scalar_lea.sflag [#allocation7], %s421
        %s423 = sand.u32 %s87, 1
        %s424 = smul.addr %s423, 16
        %s425 = scalar_lea.vmem [#allocation6], %s424
        // Predicated region
        $region61: #{tpu_custom_call.1} parent=55 // pred_check
          %p426 = pneg %p100
        $region62: #{tpu_custom_call.1} parent=55 // pred_check_branch
          %428 = sbr.rel (%p426) target = $region64
        $region63: #{tpu_custom_call.1} parent=55 // pred_region
          %429 = dma.done %s422, 256
        $region64: #{tpu_custom_call.1} parent=55 // pred_fallthru
          _
        %s430 = sand.u32 %s29, 1
        %s431 = scalar_lea.sflag [#allocation7], %s430
        %s432 = sand.u32 %s123, 1
        %s433 = smul.addr %s432, 16
        %s434 = scalar_lea.vmem [#allocation8], %s433
        // Predicated region
        $region65: #{tpu_custom_call.1} parent=55 // pred_check
          %p435 = pneg %p136
        $region66: #{tpu_custom_call.1} parent=55 // pred_check_branch
          %437 = sbr.rel (%p435) target = $region68
        $region67: #{tpu_custom_call.1} parent=55 // pred_region
          %438 = dma.done %s431, 256
        $region68: #{tpu_custom_call.1} parent=55 // pred_fallthru
          _
        %s439 = sand.u32 %s51, 1
        %s440 = scalar_lea.sflag [#allocation4], %s439
        %s441 = sand.u32 %s51, 1
        %s442 = smul.addr %s441, 128
        %s443 = scalar_lea.vmem [#allocation3], %s442
        %p444 = pneg %p64
        %p445 = pneg %p61
        %s446 = sand.u32 %s29, 1
        %s447 = scalar_lea.sflag [#allocation7], %s446
        %s448 = sand.u32 %s87, 1
        %s449 = smul.addr %s448, 16
        %s450 = scalar_lea.vmem [#allocation6], %s449
        %p451 = pneg %p100
        %p452 = pneg %p97
        %s453 = sand.u32 %s29, 1
        %s454 = scalar_lea.sflag [#allocation7], %s453
        %s455 = sand.u32 %s123, 1
        %s456 = smul.addr %s455, 16
        %s457 = scalar_lea.vmem [#allocation8], %s456
        %p458 = pneg %p136
        %p459 = pneg %p133
        %p460 = pneg %p157
        %p461 = pneg %p154
        %p462 = pneg %p178
        %p463 = pneg %p175
        %p464 = pneg %p199
        %p465 = pneg %p196
        %p466 = pneg %p220
        %p467 = pneg %p217
        %p468 = pneg %p241
        %p469 = pneg %p238
        %p470 = pneg %p262
        %p471 = pneg %p259
        %p472 = pneg %p290
        %p473 = pneg %p287
        %s474 = sand.u32 %s277, 1
        %s475 = scalar_lea.sflag [#allocation5], %s474
        %s476 = sand.u32 %s277, 1
        %s477 = smul.addr %s476, 128
        %s478 = scalar_lea.vmem [#allocation9], %s477
        %s479 = smul.u32 8, %s34
        %s480 = smul.u32 %s34, 8
        %s481 = ssub.s32 %s480, 1
        %p482 = scmp.gt.s32.totalorder %s481, 0
        %s483 = scalar_select %p482, %s481, 0
        %s484 = sadd.s32 %s34, 1
        %s485 = smul.u32 %s484, 8
        %p486 = scmp.lt.s32.totalorder %s485, 15
        %s487 = scalar_select %p486, %s485, 15
        %s488 = smul.u32 8, %s34
        %v490 = vld [vmem:[%s3] sm:$0xf]
        %v491 = vld [vmem:[%s3 + $0x4] sm:$0xf]
        %v492 = vld [vmem:[%s4] sm:$0x1]
        %v493 = vld [vmem:[%s416] sm:$0xff]
        %v494 = vld [vmem:[%s416 + $0x8] sm:$0xff]
        %v495 = vld [vmem:[%s416 + $0x10] sm:$0xff]
        %v496 = vld [vmem:[%s416 + $0x18] sm:$0xff]
        %v497 = vld [vmem:[%s416 + $0x20] sm:$0xff]
        %v498 = vld [vmem:[%s416 + $0x28] sm:$0xff]
        %v499 = vld [vmem:[%s416 + $0x30] sm:$0xff]
        %v500 = vld [vmem:[%s416 + $0x38] sm:$0xff]
        %v501 = vld [vmem:[%s416 + $0x40] sm:$0xff]
        %v502 = vld [vmem:[%s416 + $0x48] sm:$0xff]
        %v503 = vld [vmem:[%s416 + $0x50] sm:$0xff]
        %v504 = vld [vmem:[%s416 + $0x58] sm:$0xff]
        %v505 = vld [vmem:[%s416 + $0x60] sm:$0xff]
        %v506 = vld [vmem:[%s416 + $0x68] sm:$0xff]
        %v507 = vld [vmem:[%s416 + $0x70] sm:$0xff]
        %v508 = vld [vmem:[%s416 + $0x78] sm:$0xff]
        %v509 = vpack.c.bf16 %v494, %v493
        %v510 = vpack.c.bf16 %v496, %v495
        %v511 = vpack.c.bf16 %v498, %v497
        %v512 = vpack.c.bf16 %v500, %v499
        %v513 = vpack.c.bf16 %v502, %v501
        %v514 = vpack.c.bf16 %v504, %v503
        %v515 = vpack.c.bf16 %v506, %v505
        %v516 = vpack.c.bf16 %v508, %v507
        %v518 = vlaneseq
        %v519 = vshrl.u32 %v518, 7
        %v520 = vsub.s32 0, %v519
        %v521 = vrot.slane %v492, %v520
        %v525 = vunpack.c.l.b16 %v490
        %v526 = vunpack.c.l.b16 %v491
        %v527 = vpack.c.b16 %v526, %v525
        %vm529 = vcmask 130048
        %v531 = vsel %vm529, %v509, 0
        %v534 = vsel %vm529, %v510, 0
        %v537 = vsel %vm529, %v511, 0
        %v540 = vsel %vm529, %v512, 0
        %v543 = vsel %vm529, %v513, 0
        %v546 = vsel %vm529, %v514, 0
        %v549 = vsel %vm529, %v515, 0
        %v552 = vsel %vm529, %v516, 0
        %554 = vmatprep.subr.bf16.mxu0 0
        %555 = vmatpush1.bf16.msra.mxu0 0
        %556 = vmatprep.subr.bf16.mxu0 0
        %557 = vmatpush1.bf16.msra.mxu0 0
        %558 = vmatprep.subr.bf16.mxu0 0
        %559 = vmatpush1.bf16.msra.mxu0 0
        %560 = vmatprep.subr.bf16.mxu0 0
        %561 = vmatpush1.bf16.msra.mxu0 0
        %562 = vmatprep.subr.bf16.mxu0 0
        %563 = vmatpush1.bf16.msra.mxu0 0
        %564 = vmatprep.subr.bf16.mxu0 0
        %565 = vmatpush1.bf16.msra.mxu0 0
        %566 = vmatprep.subr.bf16.mxu0 0
        %567 = vmatpush1.bf16.msra.mxu0 0
        %568 = vmatprep.subr.bf16.mxu0 0
        %569 = vmatpush1.bf16.msra.mxu0 %v527
        %570 = vmatprep.subr.bf16.mxu0 0
        %571 = vmatpush2.bf16.msra.mxu0 0
        %572 = vmatprep.subr.bf16.mxu0 0
        %573 = vmatpush2.bf16.msra.mxu0 0
        %574 = vmatprep.subr.bf16.mxu0 0
        %575 = vmatpush2.bf16.msra.mxu0 0
        %576 = vmatprep.subr.bf16.mxu0 0
        %577 = vmatpush2.bf16.msra.mxu0 0
        %578 = vmatprep.subr.bf16.mxu0 0
        %579 = vmatpush2.bf16.msra.mxu0 0
        %580 = vmatprep.subr.bf16.mxu0 0
        %581 = vmatpush2.bf16.msra.mxu0 0
        %582 = vmatprep.subr.bf16.mxu0 0
        %583 = vmatpush2.bf16.msra.mxu0 0
        %584 = vmatprep.subr.bf16.mxu0 0
        %585 = vmatpush2.bf16.msra.mxu0 0
        %586 = vmatprep.mubr.bf16.mxu0 0
        %587 = vmatmul.mubr.bf16.gmra.mxu0 %v531
        %v588 = vpop.f32.mrf.mxu0
        %v589 = vadd.f32 %v521, %v588
        %v590 = vpop.f32.mrf.mxu0
        %v591 = vpop.f32.mrf.mxu0
        %v592 = vadd.f32 %v521, %v591
        %v593 = vpop.f32.mrf.mxu0
        %594 = vmatprep.mubr.bf16.mxu0 0
        %595 = vmatmul.mubr.bf16.gmra.mxu0 %v534
        %v596 = vpop.f32.mrf.mxu0
        %v597 = vadd.f32 %v521, %v596
        %v598 = vpop.f32.mrf.mxu0
        %v599 = vpop.f32.mrf.mxu0
        %v600 = vadd.f32 %v521, %v599
        %v601 = vpop.f32.mrf.mxu0
        %602 = vmatprep.mubr.bf16.mxu0 0
        %603 = vmatmul.mubr.bf16.gmra.mxu0 %v537
        %v604 = vpop.f32.mrf.mxu0
        %v605 = vadd.f32 %v521, %v604
        %v606 = vpop.f32.mrf.mxu0
        %v607 = vpop.f32.mrf.mxu0
        %v608 = vadd.f32 %v521, %v607
        %v609 = vpop.f32.mrf.mxu0
        %610 = vmatprep.mubr.bf16.mxu0 0
        %611 = vmatmul.mubr.bf16.gmra.mxu0 %v540
        %v612 = vpop.f32.mrf.mxu0
        %v613 = vadd.f32 %v521, %v612
        %v614 = vpop.f32.mrf.mxu0
        %v615 = vpop.f32.mrf.mxu0
        %v616 = vadd.f32 %v521, %v615
        %v617 = vpop.f32.mrf.mxu0
        %618 = vmatprep.mubr.bf16.mxu0 0
        %619 = vmatmul.mubr.bf16.gmra.mxu0 %v543
        %v620 = vpop.f32.mrf.mxu0
        %v621 = vadd.f32 %v521, %v620
        %v622 = vpop.f32.mrf.mxu0
        %v623 = vpop.f32.mrf.mxu0
        %v624 = vadd.f32 %v521, %v623
        %v625 = vpop.f32.mrf.mxu0
        %626 = vmatprep.mubr.bf16.mxu0 0
        %627 = vmatmul.mubr.bf16.gmra.mxu0 %v546
        %v628 = vpop.f32.mrf.mxu0
        %v629 = vadd.f32 %v521, %v628
        %v630 = vpop.f32.mrf.mxu0
        %v631 = vpop.f32.mrf.mxu0
        %v632 = vadd.f32 %v521, %v631
        %v633 = vpop.f32.mrf.mxu0
        %634 = vmatprep.mubr.bf16.mxu0 0
        %635 = vmatmul.mubr.bf16.gmra.mxu0 %v549
        %v636 = vpop.f32.mrf.mxu0
        %v637 = vadd.f32 %v521, %v636
        %v638 = vpop.f32.mrf.mxu0
        %v639 = vpop.f32.mrf.mxu0
        %v640 = vadd.f32 %v521, %v639
        %v641 = vpop.f32.mrf.mxu0
        %642 = vmatprep.mubr.bf16.mxu0 0
        %643 = vmatmul.mubr.bf16.gmra.mxu0 %v552
        %v644 = vpop.f32.mrf.mxu0
        %v645 = vadd.f32 %v521, %v644
        %v646 = vpop.f32.mrf.mxu0
        %v647 = vpop.f32.mrf.mxu0
        %v648 = vadd.f32 %v521, %v647
        %v649 = vpop.f32.mrf.mxu0
        %650 = vdwg.mxu0
        %v651 = vmax.f32 %v589, 0.0
        %v652 = vmax.f32 %v592, 0.0
        %v653 = vmax.f32 %v597, 0.0
        %v654 = vmax.f32 %v600, 0.0
        %v655 = vmax.f32 %v605, 0.0
        %v656 = vmax.f32 %v608, 0.0
        %v657 = vmax.f32 %v613, 0.0
        %v658 = vmax.f32 %v616, 0.0
        %v659 = vmax.f32 %v621, 0.0
        %v660 = vmax.f32 %v624, 0.0
        %v661 = vmax.f32 %v629, 0.0
        %v662 = vmax.f32 %v632, 0.0
        %v663 = vmax.f32 %v637, 0.0
        %v664 = vmax.f32 %v640, 0.0
        %v665 = vmax.f32 %v645, 0.0
        %v666 = vmax.f32 %v648, 0.0
        %v667 = vpack.c.bf16 %v652, %v651
        %v668 = vpack.c.bf16 %v654, %v653
        %v669 = vpack.c.bf16 %v656, %v655
        %v670 = vpack.c.bf16 %v658, %v657
        %v671 = vpack.c.bf16 %v660, %v659
        %v672 = vpack.c.bf16 %v662, %v661
        %v673 = vpack.c.bf16 %v664, %v663
        %v674 = vpack.c.bf16 %v666, %v665
        %v683 = vunpack.c.l.b16 %v667
        %v684 = vunpack.c.h.b16 %v667
        %v685 = vunpack.c.l.b16 %v668
        %v686 = vunpack.c.h.b16 %v668
        %v687 = vunpack.c.l.b16 %v669
        %v688 = vunpack.c.h.b16 %v669
        %v689 = vunpack.c.l.b16 %v670
        %v690 = vunpack.c.h.b16 %v670
        %v691 = vunpack.c.l.b16 %v671
        %v692 = vunpack.c.h.b16 %v671
        %v693 = vunpack.c.l.b16 %v672
        %v694 = vunpack.c.h.b16 %v672
        %v695 = vunpack.c.l.b16 %v673
        %v696 = vunpack.c.h.b16 %v673
        %v697 = vunpack.c.l.b16 %v674
        %v698 = vunpack.c.h.b16 %v674
        %v699 = vpack.c.b16 %v683, %v683
        %v700 = vpack.c.b16 %v684, %v684
        %v701 = vpack.c.b16 %v685, %v685
        %v702 = vpack.c.b16 %v686, %v686
        %v703 = vpack.c.b16 %v687, %v687
        %v704 = vpack.c.b16 %v688, %v688
        %v705 = vpack.c.b16 %v689, %v689
        %v706 = vpack.c.b16 %v690, %v690
        %v707 = vpack.c.b16 %v691, %v691
        %v708 = vpack.c.b16 %v692, %v692
        %v709 = vpack.c.b16 %v693, %v693
        %v710 = vpack.c.b16 %v694, %v694
        %v711 = vpack.c.b16 %v695, %v695
        %v712 = vpack.c.b16 %v696, %v696
        %v713 = vpack.c.b16 %v697, %v697
        %v714 = vpack.c.b16 %v698, %v698
        %vm715 = vsmask.f32 256
        %vm716 = vsmask.f32 4368
        %vm717 = vmor %vm715, %vm716
        %v719 = vshrl.u32 %v699, 16
        %v721 = vrot.slane %v719, 7
        %v722 = vshll.u32 %v699, 16
        %v724 = vor.u32 %v721, %v722
        %v725 = vrot.slane %v721, 4
        %v727 = vshrl.u32 %v700, 16
        %v729 = vrot.slane %v727, 7
        %v730 = vshll.u32 %v700, 16
        %v732 = vor.u32 %v729, %v730
        %v733 = vsel %vm717, %v725, %v732
        %v734 = vrot.slane %v729, 4
        %v736 = vshrl.u32 %v701, 16
        %v738 = vrot.slane %v736, 7
        %v739 = vshll.u32 %v701, 16
        %v741 = vor.u32 %v738, %v739
        %v742 = vrot.slane %v738, 4
        %v744 = vshrl.u32 %v702, 16
        %v746 = vrot.slane %v744, 7
        %v747 = vshll.u32 %v702, 16
        %v749 = vor.u32 %v746, %v747
        %v750 = vsel %vm717, %v742, %v749
        %v751 = vrot.slane %v746, 4
        %v753 = vshrl.u32 %v703, 16
        %v755 = vrot.slane %v753, 7
        %v756 = vshll.u32 %v703, 16
        %v758 = vor.u32 %v755, %v756
        %v759 = vrot.slane %v755, 4
        %v761 = vshrl.u32 %v704, 16
        %v763 = vrot.slane %v761, 7
        %v764 = vshll.u32 %v704, 16
        %v766 = vor.u32 %v763, %v764
        %v767 = vsel %vm717, %v759, %v766
        %v768 = vrot.slane %v763, 4
        %v770 = vshrl.u32 %v705, 16
        %v772 = vrot.slane %v770, 7
        %v773 = vshll.u32 %v705, 16
        %v775 = vor.u32 %v772, %v773
        %v776 = vrot.slane %v772, 4
        %v778 = vshrl.u32 %v706, 16
        %v780 = vrot.slane %v778, 7
        %v781 = vshll.u32 %v706, 16
        %v783 = vor.u32 %v780, %v781
        %v784 = vsel %vm717, %v776, %v783
        %v785 = vrot.slane %v780, 4
        %v787 = vshrl.u32 %v707, 16
        %v789 = vrot.slane %v787, 7
        %v790 = vshll.u32 %v707, 16
        %v792 = vor.u32 %v789, %v790
        %v793 = vrot.slane %v789, 4
        %v795 = vshrl.u32 %v708, 16
        %v797 = vrot.slane %v795, 7
        %v798 = vshll.u32 %v708, 16
        %v800 = vor.u32 %v797, %v798
        %v801 = vsel %vm717, %v793, %v800
        %v802 = vrot.slane %v797, 4
        %v804 = vshrl.u32 %v709, 16
        %v806 = vrot.slane %v804, 7
        %v807 = vshll.u32 %v709, 16
        %v809 = vor.u32 %v806, %v807
        %v810 = vrot.slane %v806, 4
        %v812 = vshrl.u32 %v710, 16
        %v814 = vrot.slane %v812, 7
        %v815 = vshll.u32 %v710, 16
        %v817 = vor.u32 %v814, %v815
        %v818 = vsel %vm717, %v810, %v817
        %v819 = vrot.slane %v814, 4
        %v821 = vshrl.u32 %v711, 16
        %v823 = vrot.slane %v821, 7
        %v824 = vshll.u32 %v711, 16
        %v826 = vor.u32 %v823, %v824
        %v827 = vrot.slane %v823, 4
        %v829 = vshrl.u32 %v712, 16
        %v831 = vrot.slane %v829, 7
        %v832 = vshll.u32 %v712, 16
        %v834 = vor.u32 %v831, %v832
        %v835 = vsel %vm717, %v827, %v834
        %v836 = vrot.slane %v831, 4
        %v838 = vshrl.u32 %v713, 16
        %v840 = vrot.slane %v838, 7
        %v841 = vshll.u32 %v713, 16
        %v843 = vor.u32 %v840, %v841
        %v844 = vrot.slane %v840, 4
        %v846 = vshrl.u32 %v714, 16
        %v848 = vrot.slane %v846, 7
        %v849 = vshll.u32 %v714, 16
        %v851 = vor.u32 %v848, %v849
        %v852 = vsel %vm717, %v844, %v851
        %v853 = vrot.slane %v848, 4
        %s878 = scalar_lea.vmem [#allocation2], 12
        %vm879 = vcmask 27648
        %vm880 = vsmask.f32 7938
        %vm881 = vmand %vm879, %vm880
        %v882 = vld [vmem:[%s878] sm:$0xf]
        %v883 = vsel %vm881, %v724, %v882
        %884 = vst [vmem:[%s878] sm:$0xf] %v883
        %vm885 = vcmask 27648
        %886 = vst.msk [vmem:[%s878 + $0x4] sm:$0xf] %vm885, %v733
        %vm887 = vcmask 24576
        %vm888 = vmand %vm887, %vm715
        %v889 = vld [vmem:[%s878 + $0x8] sm:$0x1]
        %v890 = vsel %vm888, %v734, %v889
        %891 = vst [vmem:[%s878 + $0x8] sm:$0x1] %v890
        %v892 = vld [vmem:[%s878 + $0xc] sm:$0xf]
        %v893 = vsel %vm881, %v741, %v892
        %894 = vst [vmem:[%s878 + $0xc] sm:$0xf] %v893
        %895 = vst.msk [vmem:[%s878 + $0x10] sm:$0xf] %vm885, %v750
        %v896 = vld [vmem:[%s878 + $0x14] sm:$0x1]
        %v897 = vsel %vm888, %v751, %v896
        %898 = vst [vmem:[%s878 + $0x14] sm:$0x1] %v897
        %v899 = vld [vmem:[%s878 + $0x18] sm:$0xf]
        %v900 = vsel %vm881, %v758, %v899
        %901 = vst [vmem:[%s878 + $0x18] sm:$0xf] %v900
        %902 = vst.msk [vmem:[%s878 + $0x1c] sm:$0xf] %vm885, %v767
        %v903 = vld [vmem:[%s878 + $0x20] sm:$0x1]
        %v904 = vsel %vm888, %v768, %v903
        %905 = vst [vmem:[%s878 + $0x20] sm:$0x1] %v904
        %v906 = vld [vmem:[%s878 + $0x24] sm:$0xf]
        %v907 = vsel %vm881, %v775, %v906
        %908 = vst [vmem:[%s878 + $0x24] sm:$0xf] %v907
        %909 = vst.msk [vmem:[%s878 + $0x28] sm:$0xf] %vm885, %v784
        %v910 = vld [vmem:[%s878 + $0x2c] sm:$0x1]
        %v911 = vsel %vm888, %v785, %v910
        %912 = vst [vmem:[%s878 + $0x2c] sm:$0x1] %v911
        %v913 = vld [vmem:[%s878 + $0x30] sm:$0xf]
        %v914 = vsel %vm881, %v792, %v913
        %915 = vst [vmem:[%s878 + $0x30] sm:$0xf] %v914
        %916 = vst.msk [vmem:[%s878 + $0x34] sm:$0xf] %vm885, %v801
        %v917 = vld [vmem:[%s878 + $0x38] sm:$0x1]
        %v918 = vsel %vm888, %v802, %v917
        %919 = vst [vmem:[%s878 + $0x38] sm:$0x1] %v918
        %v920 = vld [vmem:[%s878 + $0x3c] sm:$0xf]
        %v921 = vsel %vm881, %v809, %v920
        %922 = vst [vmem:[%s878 + $0x3c] sm:$0xf] %v921
        %923 = vst.msk [vmem:[%s878 + $0x40] sm:$0xf] %vm885, %v818
        %v924 = vld [vmem:[%s878 + $0x44] sm:$0x1]
        %v925 = vsel %vm888, %v819, %v924
        %926 = vst [vmem:[%s878 + $0x44] sm:$0x1] %v925
        %v927 = vld [vmem:[%s878 + $0x48] sm:$0xf]
        %v928 = vsel %vm881, %v826, %v927
        %929 = vst [vmem:[%s878 + $0x48] sm:$0xf] %v928
        %930 = vst.msk [vmem:[%s878 + $0x4c] sm:$0xf] %vm885, %v835
        %v931 = vld [vmem:[%s878 + $0x50] sm:$0x1]
        %v932 = vsel %vm888, %v836, %v931
        %933 = vst [vmem:[%s878 + $0x50] sm:$0x1] %v932
        %v934 = vld [vmem:[%s878 + $0x54] sm:$0xf]
        %v935 = vsel %vm881, %v843, %v934
        %936 = vst [vmem:[%s878 + $0x54] sm:$0xf] %v935
        %937 = vst.msk [vmem:[%s878 + $0x58] sm:$0xf] %vm885, %v852
        %v938 = vld [vmem:[%s878 + $0x5c] sm:$0x1]
        %v939 = vsel %vm888, %v853, %v938
        %940 = vst [vmem:[%s878 + $0x5c] sm:$0x1] %v939
        %v941 = vld [vmem:[#allocation2] sm:$0x1]
        %v942 = vsel %vm888, 0, %v941
        %943 = vst [vmem:[#allocation2] sm:$0x1] %v942
        %v944 = vld [vmem:[#allocation2 + $0xc] sm:$0x1]
        %v945 = vsel %vm888, 0, %v944
        %946 = vst [vmem:[#allocation2 + $0xc] sm:$0x1] %v945
        %v947 = vld [vmem:[#allocation2 + $0x18] sm:$0x1]
        %v948 = vsel %vm888, 0, %v947
        %949 = vst [vmem:[#allocation2 + $0x18] sm:$0x1] %v948
        %v950 = vld [vmem:[#allocation2 + $0x24] sm:$0x1]
        %v951 = vsel %vm888, 0, %v950
        %952 = vst [vmem:[#allocation2 + $0x24] sm:$0x1] %v951
        %v953 = vld [vmem:[#allocation2 + $0x30] sm:$0x1]
        %v954 = vsel %vm888, 0, %v953
        %955 = vst [vmem:[#allocation2 + $0x30] sm:$0x1] %v954
        %v956 = vld [vmem:[#allocation2 + $0x3c] sm:$0x1]
        %v957 = vsel %vm888, 0, %v956
        %958 = vst [vmem:[#allocation2 + $0x3c] sm:$0x1] %v957
        %v959 = vld [vmem:[#allocation2 + $0x48] sm:$0x1]
        %v960 = vsel %vm888, 0, %v959
        %961 = vst [vmem:[#allocation2 + $0x48] sm:$0x1] %v960
        %v962 = vld [vmem:[#allocation2 + $0x54] sm:$0x1]
        %v963 = vsel %vm888, 0, %v962
        %964 = vst [vmem:[#allocation2 + $0x54] sm:$0x1] %v963
        %v965 = vld [vmem:[#allocation2 + $0x60] sm:$0x1]
        %v966 = vsel %vm888, 0, %v965
        %967 = vst [vmem:[#allocation2 + $0x60] sm:$0x1] %v966
        %v968 = vld [vmem:[#allocation2 + $0x6c] sm:$0x1]
        %v969 = vsel %vm888, 0, %v968
        %970 = vst [vmem:[#allocation2 + $0x6c] sm:$0x1] %v969
        %vm971 = vmand %vm887, %vm880
        %v972 = vld [vmem:[#allocation2 + $0x8] sm:$0x1]
        %v973 = vsel %vm971, 0, %v972
        %974 = vst [vmem:[#allocation2 + $0x8] sm:$0x1] %v973
        %v975 = vld [vmem:[#allocation2 + $0x14] sm:$0x1]
        %v976 = vsel %vm971, 0, %v975
        %977 = vst [vmem:[#allocation2 + $0x14] sm:$0x1] %v976
        %v978 = vld [vmem:[#allocation2 + $0x20] sm:$0x1]
        %v979 = vsel %vm971, 0, %v978
        %980 = vst [vmem:[#allocation2 + $0x20] sm:$0x1] %v979
        %v981 = vld [vmem:[#allocation2 + $0x2c] sm:$0x1]
        %v982 = vsel %vm971, 0, %v981
        %983 = vst [vmem:[#allocation2 + $0x2c] sm:$0x1] %v982
        %v984 = vld [vmem:[#allocation2 + $0x38] sm:$0x1]
        %v985 = vsel %vm971, 0, %v984
        %986 = vst [vmem:[#allocation2 + $0x38] sm:$0x1] %v985
        %v987 = vld [vmem:[#allocation2 + $0x44] sm:$0x1]
        %v988 = vsel %vm971, 0, %v987
        %989 = vst [vmem:[#allocation2 + $0x44] sm:$0x1] %v988
        %v990 = vld [vmem:[#allocation2 + $0x50] sm:$0x1]
        %v991 = vsel %vm971, 0, %v990
        %992 = vst [vmem:[#allocation2 + $0x50] sm:$0x1] %v991
        %v993 = vld [vmem:[#allocation2 + $0x5c] sm:$0x1]
        %v994 = vsel %vm971, 0, %v993
        %995 = vst [vmem:[#allocation2 + $0x5c] sm:$0x1] %v994
        %v996 = vld [vmem:[#allocation2 + $0x68] sm:$0x1]
        %v997 = vsel %vm971, 0, %v996
        %998 = vst [vmem:[#allocation2 + $0x68] sm:$0x1] %v997
        %v999 = vld [vmem:[#allocation2 + $0x74] sm:$0x1]
        %v1000 = vsel %vm971, 0, %v999
        %1001 = vst [vmem:[#allocation2 + $0x74] sm:$0x1] %v1000
        %p1002 = scmp.eq.s32.totalorder %s34, 0
        // Predicated region
        $region69: #{tpu_custom_call.1} parent=55 // pred_check
          %p1003 = pneg %p1002
        $region70: #{tpu_custom_call.1} parent=55 // pred_check_branch
          %1005 = sbr.rel (%p1003) target = $region72
        $region71: #{tpu_custom_call.1} parent=55 // pred_region
          %v1006 = vld [vmem:[#allocation2] sm:$0xf]
          %v1007 = vsel %vm881, 0, %v1006
          %1008 = vst [vmem:[#allocation2] sm:$0xf] %v1007
          %1009 = vst.msk [vmem:[#allocation2 + $0x4] sm:$0xf] %vm885, 0
          %v1010 = vld [vmem:[#allocation2 + $0x8] sm:$0x1]
          %v1011 = vsel %vm888, 0, %v1010
          %1012 = vst [vmem:[#allocation2 + $0x8] sm:$0x1] %v1011
        $region72: #{tpu_custom_call.1} parent=55 // pred_fallthru
          _
        %p1013 = scmp.gt.s32.totalorder %s34, 0
        // Predicated region
        $region73: #{tpu_custom_call.1} parent=55 // pred_check
          %p1014 = pneg %p1013
        $region74: #{tpu_custom_call.1} parent=55 // pred_check_branch
          %1016 = sbr.rel (%p1014) target = $region76
        $region75: #{tpu_custom_call.1} parent=55 // pred_region
          %v1017 = vld [vmem:[%s425] sm:$0xff]
          %v1018 = vld [vmem:[%s425 + $0x8] sm:$0xff]
          %v1019 = vpack.c.bf16 %v1018, %v1017
          %v1021 = vsel %vm529, %v1019, 0
          %1023 = vmatprep.subr.bf16.mxu0 0
          %1024 = vmatpush1.bf16.msra.mxu0 0
          %1025 = vmatprep.subr.bf16.mxu0 0
          %1026 = vmatpush1.bf16.msra.mxu0 0
          %1027 = vmatprep.subr.bf16.mxu0 0
          %1028 = vmatpush1.bf16.msra.mxu0 0
          %1029 = vmatprep.subr.bf16.mxu0 0
          %1030 = vmatpush1.bf16.msra.mxu0 0
          %1031 = vmatprep.subr.bf16.mxu0 0
          %1032 = vmatpush1.bf16.msra.mxu0 0
          %1033 = vmatprep.subr.bf16.mxu0 0
          %1034 = vmatpush1.bf16.msra.mxu0 0
          %1035 = vmatprep.subr.bf16.mxu0 0
          %1036 = vmatpush1.bf16.msra.mxu0 0
          %1037 = vmatprep.subr.bf16.mxu0 0
          %1038 = vmatpush1.bf16.msra.mxu0 %v527
          %1039 = vmatprep.subr.bf16.mxu0 0
          %1040 = vmatpush2.bf16.msra.mxu0 0
          %1041 = vmatprep.subr.bf16.mxu0 0
          %1042 = vmatpush2.bf16.msra.mxu0 0
          %1043 = vmatprep.subr.bf16.mxu0 0
          %1044 = vmatpush2.bf16.msra.mxu0 0
          %1045 = vmatprep.subr.bf16.mxu0 0
          %1046 = vmatpush2.bf16.msra.mxu0 0
          %1047 = vmatprep.subr.bf16.mxu0 0
          %1048 = vmatpush2.bf16.msra.mxu0 0
          %1049 = vmatprep.subr.bf16.mxu0 0
          %1050 = vmatpush2.bf16.msra.mxu0 0
          %1051 = vmatprep.subr.bf16.mxu0 0
          %1052 = vmatpush2.bf16.msra.mxu0 0
          %1053 = vmatprep.subr.bf16.mxu0 0
          %1054 = vmatpush2.bf16.msra.mxu0 0
          %1055 = vmatprep.mubr.bf16.mxu0 0
          %1056 = vmatmul.mubr.bf16.gmra.mxu0 %v1021
          %v1057 = vpop.f32.mrf.mxu0
          %v1058 = vadd.f32 %v521, %v1057
          %v1059 = vpop.f32.mrf.mxu0
          %v1060 = vpop.f32.mrf.mxu0
          %v1061 = vadd.f32 %v521, %v1060
          %v1062 = vpop.f32.mrf.mxu0
          %1063 = vdwg.mxu0
          %v1064 = vmax.f32 %v1058, 0.0
          %v1065 = vmax.f32 %v1061, 0.0
          %v1066 = vpack.c.bf16 %v1065, %v1064
          %v1068 = vunpack.c.l.b16 %v1066
          %v1069 = vunpack.c.h.b16 %v1066
          %v1070 = vpack.c.b16 %v1068, %v1068
          %v1071 = vpack.c.b16 %v1069, %v1069
          %v1073 = vshrl.u32 %v1070, 16
          %v1075 = vrot.slane %v1073, 7
          %v1076 = vshll.u32 %v1070, 16
          %v1078 = vor.u32 %v1075, %v1076
          %v1079 = vrot.slane %v1075, 4
          %v1081 = vshrl.u32 %v1071, 16
          %v1083 = vrot.slane %v1081, 7
          %v1084 = vshll.u32 %v1071, 16
          %v1086 = vor.u32 %v1083, %v1084
          %v1087 = vsel %vm717, %v1079, %v1086
          %v1088 = vrot.slane %v1083, 4
          %v1092 = vld [vmem:[#allocation2] sm:$0xf]
          %v1093 = vsel %vm881, %v1078, %v1092
          %1094 = vst [vmem:[#allocation2] sm:$0xf] %v1093
          %1095 = vst.msk [vmem:[#allocation2 + $0x4] sm:$0xf] %vm885, %v1087
          %v1096 = vld [vmem:[#allocation2 + $0x8] sm:$0x1]
          %v1097 = vsel %vm888, %v1088, %v1096
          %1098 = vst [vmem:[#allocation2 + $0x8] sm:$0x1] %v1097
        $region76: #{tpu_custom_call.1} parent=55 // pred_fallthru
          _
        %p1099 = scmp.eq.s32.totalorder %s34, 1
        // Predicated region
        $region77: #{tpu_custom_call.1} parent=55 // pred_check
          %p1100 = pneg %p1099
        $region78: #{tpu_custom_call.1} parent=55 // pred_check_branch
          %1102 = sbr.rel (%p1100) target = $region80
        $region79: #{tpu_custom_call.1} parent=55 // pred_region
          %s1103 = scalar_lea.vmem [#allocation2], 108
          %v1104 = vld [vmem:[%s1103] sm:$0xf]
          %v1105 = vsel %vm881, 0, %v1104
          %1106 = vst [vmem:[%s1103] sm:$0xf] %v1105
          %1107 = vst.msk [vmem:[%s1103 + $0x4] sm:$0xf] %vm885, 0
          %v1108 = vld [vmem:[%s1103 + $0x8] sm:$0x1]
          %v1109 = vsel %vm888, 0, %v1108
          %1110 = vst [vmem:[%s1103 + $0x8] sm:$0x1] %v1109
        $region80: #{tpu_custom_call.1} parent=55 // pred_fallthru
          _
        %p1111 = scmp.lt.s32.totalorder %s34, 1
        // Predicated region
        $region81: #{tpu_custom_call.1} parent=55 // pred_check
          %p1112 = pneg %p1111
        $region82: #{tpu_custom_call.1} parent=55 // pred_check_branch
          %1114 = sbr.rel (%p1112) target = $region84
        $region83: #{tpu_custom_call.1} parent=55 // pred_region
          %v1115 = vld [vmem:[%s434] sm:$0xff]
          %v1116 = vld [vmem:[%s434 + $0x8] sm:$0xff]
          %v1117 = vpack.c.bf16 %v1116, %v1115
          %v1119 = vsel %vm529, %v1117, 0
          %1121 = vmatprep.subr.bf16.mxu0 0
          %1122 = vmatpush1.bf16.msra.mxu0 0
          %1123 = vmatprep.subr.bf16.mxu0 0
          %1124 = vmatpush1.bf16.msra.mxu0 0
          %1125 = vmatprep.subr.bf16.mxu0 0
          %1126 = vmatpush1.bf16.msra.mxu0 0
          %1127 = vmatprep.subr.bf16.mxu0 0
          %1128 = vmatpush1.bf16.msra.mxu0 0
          %1129 = vmatprep.subr.bf16.mxu0 0
          %1130 = vmatpush1.bf16.msra.mxu0 0
          %1131 = vmatprep.subr.bf16.mxu0 0
          %1132 = vmatpush1.bf16.msra.mxu0 0
          %1133 = vmatprep.subr.bf16.mxu0 0
          %1134 = vmatpush1.bf16.msra.mxu0 0
          %1135 = vmatprep.subr.bf16.mxu0 0
          %1136 = vmatpush1.bf16.msra.mxu0 %v527
          %1137 = vmatprep.subr.bf16.mxu0 0
          %1138 = vmatpush2.bf16.msra.mxu0 0
          %1139 = vmatprep.subr.bf16.mxu0 0
          %1140 = vmatpush2.bf16.msra.mxu0 0
          %1141 = vmatprep.subr.bf16.mxu0 0
          %1142 = vmatpush2.bf16.msra.mxu0 0
          %1143 = vmatprep.subr.bf16.mxu0 0
          %1144 = vmatpush2.bf16.msra.mxu0 0
          %1145 = vmatprep.subr.bf16.mxu0 0
          %1146 = vmatpush2.bf16.msra.mxu0 0
          %1147 = vmatprep.subr.bf16.mxu0 0
          %1148 = vmatpush2.bf16.msra.mxu0 0
          %1149 = vmatprep.subr.bf16.mxu0 0
          %1150 = vmatpush2.bf16.msra.mxu0 0
          %1151 = vmatprep.subr.bf16.mxu0 0
          %1152 = vmatpush2.bf16.msra.mxu0 0
          %1153 = vmatprep.mubr.bf16.mxu0 0
          %1154 = vmatmul.mubr.bf16.gmra.mxu0 %v1119
          %v1155 = vpop.f32.mrf.mxu0
          %v1156 = vadd.f32 %v521, %v1155
          %v1157 = vpop.f32.mrf.mxu0
          %v1158 = vpop.f32.mrf.mxu0
          %v1159 = vadd.f32 %v521, %v1158
          %v1160 = vpop.f32.mrf.mxu0
          %1161 = vdwg.mxu0
          %v1162 = vmax.f32 %v1156, 0.0
          %v1163 = vmax.f32 %v1159, 0.0
          %v1164 = vpack.c.bf16 %v1163, %v1162
          %v1166 = vunpack.c.l.b16 %v1164
          %v1167 = vunpack.c.h.b16 %v1164
          %v1168 = vpack.c.b16 %v1166, %v1166
          %v1169 = vpack.c.b16 %v1167, %v1167
          %v1171 = vshrl.u32 %v1168, 16
          %v1173 = vrot.slane %v1171, 7
          %v1174 = vshll.u32 %v1168, 16
          %v1176 = vor.u32 %v1173, %v1174
          %v1177 = vrot.slane %v1173, 4
          %v1179 = vshrl.u32 %v1169, 16
          %v1181 = vrot.slane %v1179, 7
          %v1182 = vshll.u32 %v1169, 16
          %v1184 = vor.u32 %v1181, %v1182
          %v1185 = vsel %vm717, %v1177, %v1184
          %v1186 = vrot.slane %v1181, 4
          %s1190 = scalar_lea.vmem [#allocation2], 108
          %v1191 = vld [vmem:[%s1190] sm:$0xf]
          %v1192 = vsel %vm881, %v1176, %v1191
          %1193 = vst [vmem:[%s1190] sm:$0xf] %v1192
          %1194 = vst.msk [vmem:[%s1190 + $0x4] sm:$0xf] %vm885, %v1185
          %v1195 = vld [vmem:[%s1190 + $0x8] sm:$0x1]
          %v1196 = vsel %vm888, %v1186, %v1195
          %1197 = vst [vmem:[%s1190 + $0x8] sm:$0x1] %v1196
        $region84: #{tpu_custom_call.1} parent=55 // pred_fallthru
          _
        %v1198 = vld [vmem:[#allocation2] sm:$0xf]
        %v1199 = vld [vmem:[#allocation2 + $0x4] sm:$0xf]
        %v1200 = vld [vmem:[#allocation2 + $0xc] sm:$0xf]
        %v1201 = vld [vmem:[#allocation2 + $0x10] sm:$0xf]
        %v1202 = vld [vmem:[#allocation2 + $0x18] sm:$0xf]
        %v1203 = vld [vmem:[#allocation2 + $0x1c] sm:$0xf]
        %v1204 = vld [vmem:[#allocation2 + $0x24] sm:$0xf]
        %v1205 = vld [vmem:[#allocation2 + $0x28] sm:$0xf]
        %v1206 = vld [vmem:[#allocation2 + $0x30] sm:$0xf]
        %v1207 = vld [vmem:[#allocation2 + $0x34] sm:$0xf]
        %v1208 = vld [vmem:[#allocation2 + $0x3c] sm:$0xf]
        %v1209 = vld [vmem:[#allocation2 + $0x40] sm:$0xf]
        %v1210 = vld [vmem:[#allocation2 + $0x48] sm:$0xf]
        %v1211 = vld [vmem:[#allocation2 + $0x4c] sm:$0xf]
        %v1212 = vld [vmem:[#allocation2 + $0x54] sm:$0xf]
        %v1213 = vld [vmem:[#allocation2 + $0x58] sm:$0xf]
        %v1214 = vld [vmem:[#allocation2 + $0x8] sm:$0x1]
        %v1215 = vld [vmem:[#allocation2 + $0x14] sm:$0x1]
        %v1216 = vld [vmem:[#allocation2 + $0x20] sm:$0x1]
        %v1217 = vld [vmem:[#allocation2 + $0x2c] sm:$0x1]
        %v1218 = vld [vmem:[#allocation2 + $0x38] sm:$0x1]
        %v1219 = vld [vmem:[#allocation2 + $0x44] sm:$0x1]
        %v1220 = vld [vmem:[#allocation2 + $0x50] sm:$0x1]
        %v1221 = vld [vmem:[#allocation2 + $0x5c] sm:$0x1]
        %v1222 = vld [vmem:[#allocation2] sm:$0xe]
        %v1223 = vld [vmem:[#allocation2 + $0xc] sm:$0xe]
        %v1224 = vld [vmem:[#allocation2 + $0x18] sm:$0xe]
        %v1225 = vld [vmem:[#allocation2 + $0x24] sm:$0xe]
        %v1226 = vld [vmem:[#allocation2 + $0x30] sm:$0xe]
        %v1227 = vld [vmem:[#allocation2 + $0x3c] sm:$0xe]
        %v1228 = vld [vmem:[#allocation2 + $0x48] sm:$0xe]
        %v1229 = vld [vmem:[#allocation2 + $0x54] sm:$0xe]
        %v1246 = vunpack.c.l.b16 %v1198
        %v1247 = vunpack.c.l.b16 %v1199
        %v1248 = vunpack.c.l.b16 %v1200
        %v1249 = vunpack.c.l.b16 %v1201
        %v1250 = vunpack.c.l.b16 %v1202
        %v1251 = vunpack.c.l.b16 %v1203
        %v1252 = vunpack.c.l.b16 %v1204
        %v1253 = vunpack.c.l.b16 %v1205
        %v1254 = vunpack.c.l.b16 %v1206
        %v1255 = vunpack.c.l.b16 %v1207
        %v1256 = vunpack.c.l.b16 %v1208
        %v1257 = vunpack.c.l.b16 %v1209
        %v1258 = vunpack.c.l.b16 %v1210
        %v1259 = vunpack.c.l.b16 %v1211
        %v1260 = vunpack.c.l.b16 %v1212
        %v1261 = vunpack.c.l.b16 %v1213
        %v1262 = vpack.c.b16 %v1247, %v1246
        %v1263 = vpack.c.b16 %v1249, %v1248
        %v1264 = vpack.c.b16 %v1251, %v1250
        %v1265 = vpack.c.b16 %v1253, %v1252
        %v1266 = vpack.c.b16 %v1255, %v1254
        %v1267 = vpack.c.b16 %v1257, %v1256
        %v1268 = vpack.c.b16 %v1259, %v1258
        %v1269 = vpack.c.b16 %v1261, %v1260
        %v1278 = vunpack.c.l.b16 %v1214
        %v1279 = vunpack.c.l.b16 %v1215
        %v1280 = vunpack.c.l.b16 %v1216
        %v1281 = vunpack.c.l.b16 %v1217
        %v1282 = vunpack.c.l.b16 %v1218
        %v1283 = vunpack.c.l.b16 %v1219
        %v1284 = vunpack.c.l.b16 %v1220
        %v1285 = vunpack.c.l.b16 %v1221
        %v1286 = vpack.c.b16 %v1278, %v1278
        %v1287 = vpack.c.b16 %v1279, %v1279
        %v1288 = vpack.c.b16 %v1280, %v1280
        %v1289 = vpack.c.b16 %v1281, %v1281
        %v1290 = vpack.c.b16 %v1282, %v1282
        %v1291 = vpack.c.b16 %v1283, %v1283
        %v1292 = vpack.c.b16 %v1284, %v1284
        %v1293 = vpack.c.b16 %v1285, %v1285
        %vm1294 = vsmask.f32 7424
        %v1296 = vshrl.u32 %v1262, 16
        %v1298 = vshll.u32 %v1262, 16
        %v1300 = vrot.slane %v1298, 1
        %v1301 = vor.u32 %v1296, %v1300
        %v1303 = vshll.u32 %v1286, 16
        %v1305 = vrot.slane %v1303, 1
        %v1306 = vsel %vm1294, %v1301, %v1305
        %v1308 = vshrl.u32 %v1263, 16
        %v1310 = vshll.u32 %v1263, 16
        %v1312 = vrot.slane %v1310, 1
        %v1313 = vor.u32 %v1308, %v1312
        %v1315 = vshll.u32 %v1287, 16
        %v1317 = vrot.slane %v1315, 1
        %v1318 = vsel %vm1294, %v1313, %v1317
        %v1320 = vshrl.u32 %v1264, 16
        %v1322 = vshll.u32 %v1264, 16
        %v1324 = vrot.slane %v1322, 1
        %v1325 = vor.u32 %v1320, %v1324
        %v1327 = vshll.u32 %v1288, 16
        %v1329 = vrot.slane %v1327, 1
        %v1330 = vsel %vm1294, %v1325, %v1329
        %v1332 = vshrl.u32 %v1265, 16
        %v1334 = vshll.u32 %v1265, 16
        %v1336 = vrot.slane %v1334, 1
        %v1337 = vor.u32 %v1332, %v1336
        %v1339 = vshll.u32 %v1289, 16
        %v1341 = vrot.slane %v1339, 1
        %v1342 = vsel %vm1294, %v1337, %v1341
        %v1344 = vshrl.u32 %v1266, 16
        %v1346 = vshll.u32 %v1266, 16
        %v1348 = vrot.slane %v1346, 1
        %v1349 = vor.u32 %v1344, %v1348
        %v1351 = vshll.u32 %v1290, 16
        %v1353 = vrot.slane %v1351, 1
        %v1354 = vsel %vm1294, %v1349, %v1353
        %v1356 = vshrl.u32 %v1267, 16
        %v1358 = vshll.u32 %v1267, 16
        %v1360 = vrot.slane %v1358, 1
        %v1361 = vor.u32 %v1356, %v1360
        %v1363 = vshll.u32 %v1291, 16
        %v1365 = vrot.slane %v1363, 1
        %v1366 = vsel %vm1294, %v1361, %v1365
        %v1368 = vshrl.u32 %v1268, 16
        %v1370 = vshll.u32 %v1268, 16
        %v1372 = vrot.slane %v1370, 1
        %v1373 = vor.u32 %v1368, %v1372
        %v1375 = vshll.u32 %v1292, 16
        %v1377 = vrot.slane %v1375, 1
        %v1378 = vsel %vm1294, %v1373, %v1377
        %v1380 = vshrl.u32 %v1269, 16
        %v1382 = vshll.u32 %v1269, 16
        %v1384 = vrot.slane %v1382, 1
        %v1385 = vor.u32 %v1380, %v1384
        %v1387 = vshll.u32 %v1293, 16
        %v1389 = vrot.slane %v1387, 1
        %v1390 = vsel %vm1294, %v1385, %v1389
        %1391 = vrot.lane.b32.xlu0 %v1306, 4
        %v1392 = vpop.permute.xlu0 %1391
        %1393 = vrot.lane.b32.xlu0 %v1318, 4
        %v1394 = vpop.permute.xlu0 %1393
        %1395 = vrot.lane.b32.xlu0 %v1330, 4
        %v1396 = vpop.permute.xlu0 %1395
        %1397 = vrot.lane.b32.xlu0 %v1342, 4
        %v1398 = vpop.permute.xlu0 %1397
        %1399 = vrot.lane.b32.xlu0 %v1354, 4
        %v1400 = vpop.permute.xlu0 %1399
        %1401 = vrot.lane.b32.xlu0 %v1366, 4
        %v1402 = vpop.permute.xlu0 %1401
        %1403 = vrot.lane.b32.xlu0 %v1378, 4
        %v1404 = vpop.permute.xlu0 %1403
        %1405 = vrot.lane.b32.xlu0 %v1390, 4
        %v1406 = vpop.permute.xlu0 %1405
        %v1415 = vunpack.c.l.b16 %v1222
        %v1416 = vunpack.c.l.b16 %v1223
        %v1417 = vunpack.c.l.b16 %v1224
        %v1418 = vunpack.c.l.b16 %v1225
        %v1419 = vunpack.c.l.b16 %v1226
        %v1420 = vunpack.c.l.b16 %v1227
        %v1421 = vunpack.c.l.b16 %v1228
        %v1422 = vunpack.c.l.b16 %v1229
        %v1423 = vpack.c.b16 %v1247, %v1415
        %v1424 = vpack.c.b16 %v1249, %v1416
        %v1425 = vpack.c.b16 %v1251, %v1417
        %v1426 = vpack.c.b16 %v1253, %v1418
        %v1427 = vpack.c.b16 %v1255, %v1419
        %v1428 = vpack.c.b16 %v1257, %v1420
        %v1429 = vpack.c.b16 %v1259, %v1421
        %v1430 = vpack.c.b16 %v1261, %v1422
        %vm1431 = vcmask 1046528
        %v1432 = vrot.slane %v1423, 1
        %v1433 = vrot.slane %v1286, 1
        %v1434 = vsel %vm1431, %v1432, %v1433
        %v1435 = vrot.slane %v1424, 1
        %v1436 = vrot.slane %v1287, 1
        %v1437 = vsel %vm1431, %v1435, %v1436
        %v1438 = vrot.slane %v1425, 1
        %v1439 = vrot.slane %v1288, 1
        %v1440 = vsel %vm1431, %v1438, %v1439
        %v1441 = vrot.slane %v1426, 1
        %v1442 = vrot.slane %v1289, 1
        %v1443 = vsel %vm1431, %v1441, %v1442
        %v1444 = vrot.slane %v1427, 1
        %v1445 = vrot.slane %v1290, 1
        %v1446 = vsel %vm1431, %v1444, %v1445
        %v1447 = vrot.slane %v1428, 1
        %v1448 = vrot.slane %v1291, 1
        %v1449 = vsel %vm1431, %v1447, %v1448
        %v1450 = vrot.slane %v1429, 1
        %v1451 = vrot.slane %v1292, 1
        %v1452 = vsel %vm1431, %v1450, %v1451
        %v1453 = vrot.slane %v1430, 1
        %v1454 = vrot.slane %v1293, 1
        %v1455 = vsel %vm1431, %v1453, %v1454
        %1456 = vrot.lane.b32.xlu0 %v1434, 8
        %v1457 = vpop.permute.xlu0 %1456
        %1458 = vrot.lane.b32.xlu0 %v1437, 8
        %v1459 = vpop.permute.xlu0 %1458
        %1460 = vrot.lane.b32.xlu0 %v1440, 8
        %v1461 = vpop.permute.xlu0 %1460
        %1462 = vrot.lane.b32.xlu0 %v1443, 8
        %v1463 = vpop.permute.xlu0 %1462
        %1464 = vrot.lane.b32.xlu0 %v1446, 8
        %v1465 = vpop.permute.xlu0 %1464
        %1466 = vrot.lane.b32.xlu0 %v1449, 8
        %v1467 = vpop.permute.xlu0 %1466
        %1468 = vrot.lane.b32.xlu0 %v1452, 8
        %v1469 = vpop.permute.xlu0 %1468
        %1470 = vrot.lane.b32.xlu0 %v1455, 8
        %v1471 = vpop.permute.xlu0 %1470
        %vm1472 = vcmask 31744
        %v1474 = vsel %vm1472, %v1262, %v1392
        %v1476 = vsel %vm1472, %v1263, %v1394
        %v1478 = vsel %vm1472, %v1264, %v1396
        %v1480 = vsel %vm1472, %v1265, %v1398
        %v1482 = vsel %vm1472, %v1266, %v1400
        %v1484 = vsel %vm1472, %v1267, %v1402
        %v1486 = vsel %vm1472, %v1268, %v1404
        %v1488 = vsel %vm1472, %v1269, %v1406
        %vm1489 = vcmask 64512
        %v1491 = vsel %vm1489, %v1474, %v1457
        %v1493 = vsel %vm1489, %v1476, %v1459
        %v1495 = vsel %vm1489, %v1478, %v1461
        %v1497 = vsel %vm1489, %v1480, %v1463
        %v1499 = vsel %vm1489, %v1482, %v1465
        %v1501 = vsel %vm1489, %v1484, %v1467
        %v1503 = vsel %vm1489, %v1486, %v1469
        %v1505 = vsel %vm1489, %v1488, %v1471
        %v1506 = vld [vmem:[%s5] sm:$0xf]
        %v1507 = vld [vmem:[%s5 + $0x4] sm:$0x3]
        %v1508 = vld [vmem:[%s878] sm:$0xf]
        %v1509 = vld [vmem:[%s878 + $0x4] sm:$0xf]
        %v1510 = vld [vmem:[%s878 + $0xc] sm:$0xf]
        %v1511 = vld [vmem:[%s878 + $0x10] sm:$0xf]
        %v1512 = vld [vmem:[%s878 + $0x18] sm:$0xf]
        %v1513 = vld [vmem:[%s878 + $0x1c] sm:$0xf]
        %v1514 = vld [vmem:[%s878 + $0x24] sm:$0xf]
        %v1515 = vld [vmem:[%s878 + $0x28] sm:$0xf]
        %v1516 = vld [vmem:[%s878 + $0x30] sm:$0xf]
        %v1517 = vld [vmem:[%s878 + $0x34] sm:$0xf]
        %v1518 = vld [vmem:[%s878 + $0x3c] sm:$0xf]
        %v1519 = vld [vmem:[%s878 + $0x40] sm:$0xf]
        %v1520 = vld [vmem:[%s878 + $0x48] sm:$0xf]
        %v1521 = vld [vmem:[%s878 + $0x4c] sm:$0xf]
        %v1522 = vld [vmem:[%s878 + $0x54] sm:$0xf]
        %v1523 = vld [vmem:[%s878 + $0x58] sm:$0xf]
        %v1524 = vld [vmem:[%s878 + $0x8] sm:$0x1]
        %v1525 = vld [vmem:[%s878 + $0x14] sm:$0x1]
        %v1526 = vld [vmem:[%s878 + $0x20] sm:$0x1]
        %v1527 = vld [vmem:[%s878 + $0x2c] sm:$0x1]
        %v1528 = vld [vmem:[%s878 + $0x38] sm:$0x1]
        %v1529 = vld [vmem:[%s878 + $0x44] sm:$0x1]
        %v1530 = vld [vmem:[%s878 + $0x50] sm:$0x1]
        %v1531 = vld [vmem:[%s878 + $0x5c] sm:$0x1]
        %v1532 = vld [vmem:[%s878] sm:$0xe]
        %v1533 = vld [vmem:[%s878 + $0xc] sm:$0xe]
        %v1534 = vld [vmem:[%s878 + $0x18] sm:$0xe]
        %v1535 = vld [vmem:[%s878 + $0x24] sm:$0xe]
        %v1536 = vld [vmem:[%s878 + $0x30] sm:$0xe]
        %v1537 = vld [vmem:[%s878 + $0x3c] sm:$0xe]
        %v1538 = vld [vmem:[%s878 + $0x48] sm:$0xe]
        %v1539 = vld [vmem:[%s878 + $0x54] sm:$0xe]
        %v1556 = vunpack.c.l.b16 %v1508
        %v1557 = vunpack.c.l.b16 %v1509
        %v1558 = vunpack.c.l.b16 %v1510
        %v1559 = vunpack.c.l.b16 %v1511
        %v1560 = vunpack.c.l.b16 %v1512
        %v1561 = vunpack.c.l.b16 %v1513
        %v1562 = vunpack.c.l.b16 %v1514
        %v1563 = vunpack.c.l.b16 %v1515
        %v1564 = vunpack.c.l.b16 %v1516
        %v1565 = vunpack.c.l.b16 %v1517
        %v1566 = vunpack.c.l.b16 %v1518
        %v1567 = vunpack.c.l.b16 %v1519
        %v1568 = vunpack.c.l.b16 %v1520
        %v1569 = vunpack.c.l.b16 %v1521
        %v1570 = vunpack.c.l.b16 %v1522
        %v1571 = vunpack.c.l.b16 %v1523
        %v1572 = vpack.c.b16 %v1557, %v1556
        %v1573 = vpack.c.b16 %v1559, %v1558
        %v1574 = vpack.c.b16 %v1561, %v1560
        %v1575 = vpack.c.b16 %v1563, %v1562
        %v1576 = vpack.c.b16 %v1565, %v1564
        %v1577 = vpack.c.b16 %v1567, %v1566
        %v1578 = vpack.c.b16 %v1569, %v1568
        %v1579 = vpack.c.b16 %v1571, %v1570
        %v1588 = vunpack.c.l.b16 %v1524
        %v1589 = vunpack.c.l.b16 %v1525
        %v1590 = vunpack.c.l.b16 %v1526
        %v1591 = vunpack.c.l.b16 %v1527
        %v1592 = vunpack.c.l.b16 %v1528
        %v1593 = vunpack.c.l.b16 %v1529
        %v1594 = vunpack.c.l.b16 %v1530
        %v1595 = vunpack.c.l.b16 %v1531
        %v1596 = vpack.c.b16 %v1588, %v1588
        %v1597 = vpack.c.b16 %v1589, %v1589
        %v1598 = vpack.c.b16 %v1590, %v1590
        %v1599 = vpack.c.b16 %v1591, %v1591
        %v1600 = vpack.c.b16 %v1592, %v1592
        %v1601 = vpack.c.b16 %v1593, %v1593
        %v1602 = vpack.c.b16 %v1594, %v1594
        %v1603 = vpack.c.b16 %v1595, %v1595
        %v1605 = vshrl.u32 %v1572, 16
        %v1607 = vshll.u32 %v1572, 16
        %v1609 = vrot.slane %v1607, 1
        %v1610 = vor.u32 %v1605, %v1609
        %v1612 = vshll.u32 %v1596, 16
        %v1614 = vrot.slane %v1612, 1
        %v1615 = vsel %vm1294, %v1610, %v1614
        %v1617 = vshrl.u32 %v1573, 16
        %v1619 = vshll.u32 %v1573, 16
        %v1621 = vrot.slane %v1619, 1
        %v1622 = vor.u32 %v1617, %v1621
        %v1624 = vshll.u32 %v1597, 16
        %v1626 = vrot.slane %v1624, 1
        %v1627 = vsel %vm1294, %v1622, %v1626
        %v1629 = vshrl.u32 %v1574, 16
        %v1631 = vshll.u32 %v1574, 16
        %v1633 = vrot.slane %v1631, 1
        %v1634 = vor.u32 %v1629, %v1633
        %v1636 = vshll.u32 %v1598, 16
        %v1638 = vrot.slane %v1636, 1
        %v1639 = vsel %vm1294, %v1634, %v1638
        %v1641 = vshrl.u32 %v1575, 16
        %v1643 = vshll.u32 %v1575, 16
        %v1645 = vrot.slane %v1643, 1
        %v1646 = vor.u32 %v1641, %v1645
        %v1648 = vshll.u32 %v1599, 16
        %v1650 = vrot.slane %v1648, 1
        %v1651 = vsel %vm1294, %v1646, %v1650
        %v1653 = vshrl.u32 %v1576, 16
        %v1655 = vshll.u32 %v1576, 16
        %v1657 = vrot.slane %v1655, 1
        %v1658 = vor.u32 %v1653, %v1657
        %v1660 = vshll.u32 %v1600, 16
        %v1662 = vrot.slane %v1660, 1
        %v1663 = vsel %vm1294, %v1658, %v1662
        %v1665 = vshrl.u32 %v1577, 16
        %v1667 = vshll.u32 %v1577, 16
        %v1669 = vrot.slane %v1667, 1
        %v1670 = vor.u32 %v1665, %v1669
        %v1672 = vshll.u32 %v1601, 16
        %v1674 = vrot.slane %v1672, 1
        %v1675 = vsel %vm1294, %v1670, %v1674
        %v1677 = vshrl.u32 %v1578, 16
        %v1679 = vshll.u32 %v1578, 16
        %v1681 = vrot.slane %v1679, 1
        %v1682 = vor.u32 %v1677, %v1681
        %v1684 = vshll.u32 %v1602, 16
        %v1686 = vrot.slane %v1684, 1
        %v1687 = vsel %vm1294, %v1682, %v1686
        %v1689 = vshrl.u32 %v1579, 16
        %v1691 = vshll.u32 %v1579, 16
        %v1693 = vrot.slane %v1691, 1
        %v1694 = vor.u32 %v1689, %v1693
        %v1696 = vshll.u32 %v1603, 16
        %v1698 = vrot.slane %v1696, 1
        %v1699 = vsel %vm1294, %v1694, %v1698
        %1700 = vrot.lane.b32.xlu0 %v1615, 4
        %v1701 = vpop.permute.xlu0 %1700
        %1702 = vrot.lane.b32.xlu0 %v1627, 4
        %v1703 = vpop.permute.xlu0 %1702
        %1704 = vrot.lane.b32.xlu0 %v1639, 4
        %v1705 = vpop.permute.xlu0 %1704
        %1706 = vrot.lane.b32.xlu0 %v1651, 4
        %v1707 = vpop.permute.xlu0 %1706
        %1708 = vrot.lane.b32.xlu0 %v1663, 4
        %v1709 = vpop.permute.xlu0 %1708
        %1710 = vrot.lane.b32.xlu0 %v1675, 4
        %v1711 = vpop.permute.xlu0 %1710
        %1712 = vrot.lane.b32.xlu0 %v1687, 4
        %v1713 = vpop.permute.xlu0 %1712
        %1714 = vrot.lane.b32.xlu0 %v1699, 4
        %v1715 = vpop.permute.xlu0 %1714
        %v1724 = vunpack.c.l.b16 %v1532
        %v1725 = vunpack.c.l.b16 %v1533
        %v1726 = vunpack.c.l.b16 %v1534
        %v1727 = vunpack.c.l.b16 %v1535
        %v1728 = vunpack.c.l.b16 %v1536
        %v1729 = vunpack.c.l.b16 %v1537
        %v1730 = vunpack.c.l.b16 %v1538
        %v1731 = vunpack.c.l.b16 %v1539
        %v1732 = vpack.c.b16 %v1557, %v1724
        %v1733 = vpack.c.b16 %v1559, %v1725
        %v1734 = vpack.c.b16 %v1561, %v1726
        %v1735 = vpack.c.b16 %v1563, %v1727
        %v1736 = vpack.c.b16 %v1565, %v1728
        %v1737 = vpack.c.b16 %v1567, %v1729
        %v1738 = vpack.c.b16 %v1569, %v1730
        %v1739 = vpack.c.b16 %v1571, %v1731
        %v1740 = vrot.slane %v1732, 1
        %v1741 = vrot.slane %v1596, 1
        %v1742 = vsel %vm1431, %v1740, %v1741
        %v1743 = vrot.slane %v1733, 1
        %v1744 = vrot.slane %v1597, 1
        %v1745 = vsel %vm1431, %v1743, %v1744
        %v1746 = vrot.slane %v1734, 1
        %v1747 = vrot.slane %v1598, 1
        %v1748 = vsel %vm1431, %v1746, %v1747
        %v1749 = vrot.slane %v1735, 1
        %v1750 = vrot.slane %v1599, 1
        %v1751 = vsel %vm1431, %v1749, %v1750
        %v1752 = vrot.slane %v1736, 1
        %v1753 = vrot.slane %v1600, 1
        %v1754 = vsel %vm1431, %v1752, %v1753
        %v1755 = vrot.slane %v1737, 1
        %v1756 = vrot.slane %v1601, 1
        %v1757 = vsel %vm1431, %v1755, %v1756
        %v1758 = vrot.slane %v1738, 1
        %v1759 = vrot.slane %v1602, 1
        %v1760 = vsel %vm1431, %v1758, %v1759
        %v1761 = vrot.slane %v1739, 1
        %v1762 = vrot.slane %v1603, 1
        %v1763 = vsel %vm1431, %v1761, %v1762
        %1764 = vrot.lane.b32.xlu0 %v1742, 8
        %v1765 = vpop.permute.xlu0 %1764
        %1766 = vrot.lane.b32.xlu0 %v1745, 8
        %v1767 = vpop.permute.xlu0 %1766
        %1768 = vrot.lane.b32.xlu0 %v1748, 8
        %v1769 = vpop.permute.xlu0 %1768
        %1770 = vrot.lane.b32.xlu0 %v1751, 8
        %v1771 = vpop.permute.xlu0 %1770
        %1772 = vrot.lane.b32.xlu0 %v1754, 8
        %v1773 = vpop.permute.xlu0 %1772
        %1774 = vrot.lane.b32.xlu0 %v1757, 8
        %v1775 = vpop.permute.xlu0 %1774
        %1776 = vrot.lane.b32.xlu0 %v1760, 8
        %v1777 = vpop.permute.xlu0 %1776
        %1778 = vrot.lane.b32.xlu0 %v1763, 8
        %v1779 = vpop.permute.xlu0 %1778
        %v1781 = vsel %vm1472, %v1572, %v1701
        %v1783 = vsel %vm1472, %v1573, %v1703
        %v1785 = vsel %vm1472, %v1574, %v1705
        %v1787 = vsel %vm1472, %v1575, %v1707
        %v1789 = vsel %vm1472, %v1576, %v1709
        %v1791 = vsel %vm1472, %v1577, %v1711
        %v1793 = vsel %vm1472, %v1578, %v1713
        %v1795 = vsel %vm1472, %v1579, %v1715
        %v1797 = vsel %vm1489, %v1781, %v1765
        %v1799 = vsel %vm1489, %v1783, %v1767
        %v1801 = vsel %vm1489, %v1785, %v1769
        %v1803 = vsel %vm1489, %v1787, %v1771
        %v1805 = vsel %vm1489, %v1789, %v1773
        %v1807 = vsel %vm1489, %v1791, %v1775
        %v1809 = vsel %vm1489, %v1793, %v1777
        %v1811 = vsel %vm1489, %v1795, %v1779
        %s1812 = scalar_lea.vmem %s5, 8
        %v1813 = vld [vmem:[%s1812] sm:$0xf]
        %v1814 = vld [vmem:[%s1812 + $0x4] sm:$0x3]
        %v1817 = vunpack.c.l.b16 %v1813
        %v1818 = vunpack.c.l.b16 %v1814
        %v1819 = vpack.c.b16 %v1818, %v1817
        %vm1820 = vcmask 97280
        %v1821 = vsel %vm1820, %v1797, 0
        %v1823 = vsel %vm1820, %v1799, 0
        %v1825 = vsel %vm1820, %v1801, 0
        %v1827 = vsel %vm1820, %v1803, 0
        %v1829 = vsel %vm1820, %v1805, 0
        %v1831 = vsel %vm1820, %v1807, 0
        %v1833 = vsel %vm1820, %v1809, 0
        %v1835 = vsel %vm1820, %v1811, 0
        %vm1837 = vcmask 1045504
        %v1839 = vsel %vm1837, %v1819, 0
        %1841 = vmatprep.subr.bf16.mxu0 0
        %1842 = vmatpush1.bf16.msra.mxu0 0
        %1843 = vmatprep.subr.bf16.mxu0 0
        %1844 = vmatpush1.bf16.msra.mxu0 0
        %1845 = vmatprep.subr.bf16.mxu0 0
        %1846 = vmatpush1.bf16.msra.mxu0 0
        %1847 = vmatprep.subr.bf16.mxu0 0
        %1848 = vmatpush1.bf16.msra.mxu0 0
        %1849 = vmatprep.subr.bf16.mxu0 0
        %1850 = vmatpush1.bf16.msra.mxu0 0
        %1851 = vmatprep.subr.bf16.mxu0 0
        %1852 = vmatpush1.bf16.msra.mxu0 0
        %1853 = vmatprep.subr.bf16.mxu0 0
        %1854 = vmatpush1.bf16.msra.mxu0 0
        %1855 = vmatprep.subr.bf16.mxu0 0
        %1856 = vmatpush1.bf16.msra.mxu0 %v1839
        %1857 = vmatprep.subr.bf16.mxu0 0
        %1858 = vmatpush2.bf16.msra.mxu0 0
        %1859 = vmatprep.subr.bf16.mxu0 0
        %1860 = vmatpush2.bf16.msra.mxu0 0
        %1861 = vmatprep.subr.bf16.mxu0 0
        %1862 = vmatpush2.bf16.msra.mxu0 0
        %1863 = vmatprep.subr.bf16.mxu0 0
        %1864 = vmatpush2.bf16.msra.mxu0 0
        %1865 = vmatprep.subr.bf16.mxu0 0
        %1866 = vmatpush2.bf16.msra.mxu0 0
        %1867 = vmatprep.subr.bf16.mxu0 0
        %1868 = vmatpush2.bf16.msra.mxu0 0
        %1869 = vmatprep.subr.bf16.mxu0 0
        %1870 = vmatpush2.bf16.msra.mxu0 0
        %1871 = vmatprep.subr.bf16.mxu0 0
        %1872 = vmatpush2.bf16.msra.mxu0 0
        %1873 = vmatprep.mubr.bf16.mxu0 0
        %1874 = vmatmul.mubr.bf16.gmra.mxu0 %v1821
        %v1875 = vpop.f32.mrf.mxu0
        %v1876 = vadd.f32 0.0, %v1875
        %v1877 = vpop.f32.mrf.mxu0
        %v1878 = vpop.f32.mrf.mxu0
        %v1879 = vadd.f32 0.0, %v1878
        %v1880 = vpop.f32.mrf.mxu0
        %1881 = vmatprep.mubr.bf16.mxu0 0
        %1882 = vmatmul.mubr.bf16.gmra.mxu0 %v1823
        %v1883 = vpop.f32.mrf.mxu0
        %v1884 = vadd.f32 0.0, %v1883
        %v1885 = vpop.f32.mrf.mxu0
        %v1886 = vpop.f32.mrf.mxu0
        %v1887 = vadd.f32 0.0, %v1886
        %v1888 = vpop.f32.mrf.mxu0
        %1889 = vmatprep.mubr.bf16.mxu0 0
        %1890 = vmatmul.mubr.bf16.gmra.mxu0 %v1825
        %v1891 = vpop.f32.mrf.mxu0
        %v1892 = vadd.f32 0.0, %v1891
        %v1893 = vpop.f32.mrf.mxu0
        %v1894 = vpop.f32.mrf.mxu0
        %v1895 = vadd.f32 0.0, %v1894
        %v1896 = vpop.f32.mrf.mxu0
        %1897 = vmatprep.mubr.bf16.mxu0 0
        %1898 = vmatmul.mubr.bf16.gmra.mxu0 %v1827
        %v1899 = vpop.f32.mrf.mxu0
        %v1900 = vadd.f32 0.0, %v1899
        %v1901 = vpop.f32.mrf.mxu0
        %v1902 = vpop.f32.mrf.mxu0
        %v1903 = vadd.f32 0.0, %v1902
        %v1904 = vpop.f32.mrf.mxu0
        %1905 = vmatprep.mubr.bf16.mxu0 0
        %1906 = vmatmul.mubr.bf16.gmra.mxu0 %v1829
        %v1907 = vpop.f32.mrf.mxu0
        %v1908 = vadd.f32 0.0, %v1907
        %v1909 = vpop.f32.mrf.mxu0
        %v1910 = vpop.f32.mrf.mxu0
        %v1911 = vadd.f32 0.0, %v1910
        %v1912 = vpop.f32.mrf.mxu0
        %1913 = vmatprep.mubr.bf16.mxu0 0
        %1914 = vmatmul.mubr.bf16.gmra.mxu0 %v1831
        %v1915 = vpop.f32.mrf.mxu0
        %v1916 = vadd.f32 0.0, %v1915
        %v1917 = vpop.f32.mrf.mxu0
        %v1918 = vpop.f32.mrf.mxu0
        %v1919 = vadd.f32 0.0, %v1918
        %v1920 = vpop.f32.mrf.mxu0
        %1921 = vmatprep.mubr.bf16.mxu0 0
        %1922 = vmatmul.mubr.bf16.gmra.mxu0 %v1833
        %v1923 = vpop.f32.mrf.mxu0
        %v1924 = vadd.f32 0.0, %v1923
        %v1925 = vpop.f32.mrf.mxu0
        %v1926 = vpop.f32.mrf.mxu0
        %v1927 = vadd.f32 0.0, %v1926
        %v1928 = vpop.f32.mrf.mxu0
        %1929 = vmatprep.mubr.bf16.mxu0 0
        %1930 = vmatmul.mubr.bf16.gmra.mxu0 %v1835
        %v1931 = vpop.f32.mrf.mxu0
        %v1932 = vadd.f32 0.0, %v1931
        %v1933 = vpop.f32.mrf.mxu0
        %v1934 = vpop.f32.mrf.mxu0
        %v1935 = vadd.f32 0.0, %v1934
        %v1936 = vpop.f32.mrf.mxu0
        %1937 = vdwg.mxu0
        %v1940 = vunpack.c.l.b16 %v1506
        %v1941 = vunpack.c.l.b16 %v1507
        %v1942 = vpack.c.b16 %v1941, %v1940
        %v1943 = vsel %vm1820, %v1491, 0
        %v1945 = vsel %vm1820, %v1493, 0
        %v1947 = vsel %vm1820, %v1495, 0
        %v1949 = vsel %vm1820, %v1497, 0
        %v1951 = vsel %vm1820, %v1499, 0
        %v1953 = vsel %vm1820, %v1501, 0
        %v1955 = vsel %vm1820, %v1503, 0
        %v1957 = vsel %vm1820, %v1505, 0
        %v1960 = vsel %vm1837, %v1942, 0
        %1962 = vmatprep.subr.bf16.mxu0 0
        %1963 = vmatpush1.bf16.msra.mxu0 0
        %1964 = vmatprep.subr.bf16.mxu0 0
        %1965 = vmatpush1.bf16.msra.mxu0 0
        %1966 = vmatprep.subr.bf16.mxu0 0
        %1967 = vmatpush1.bf16.msra.mxu0 0
        %1968 = vmatprep.subr.bf16.mxu0 0
        %1969 = vmatpush1.bf16.msra.mxu0 0
        %1970 = vmatprep.subr.bf16.mxu0 0
        %1971 = vmatpush1.bf16.msra.mxu0 0
        %1972 = vmatprep.subr.bf16.mxu0 0
        %1973 = vmatpush1.bf16.msra.mxu0 0
        %1974 = vmatprep.subr.bf16.mxu0 0
        %1975 = vmatpush1.bf16.msra.mxu0 0
        %1976 = vmatprep.subr.bf16.mxu0 0
        %1977 = vmatpush1.bf16.msra.mxu0 %v1960
        %1978 = vmatprep.subr.bf16.mxu0 0
        %1979 = vmatpush2.bf16.msra.mxu0 0
        %1980 = vmatprep.subr.bf16.mxu0 0
        %1981 = vmatpush2.bf16.msra.mxu0 0
        %1982 = vmatprep.subr.bf16.mxu0 0
        %1983 = vmatpush2.bf16.msra.mxu0 0
        %1984 = vmatprep.subr.bf16.mxu0 0
        %1985 = vmatpush2.bf16.msra.mxu0 0
        %1986 = vmatprep.subr.bf16.mxu0 0
        %1987 = vmatpush2.bf16.msra.mxu0 0
        %1988 = vmatprep.subr.bf16.mxu0 0
        %1989 = vmatpush2.bf16.msra.mxu0 0
        %1990 = vmatprep.subr.bf16.mxu0 0
        %1991 = vmatpush2.bf16.msra.mxu0 0
        %1992 = vmatprep.subr.bf16.mxu0 0
        %1993 = vmatpush2.bf16.msra.mxu0 0
        %1994 = vmatprep.mubr.bf16.mxu0 0
        %1995 = vmatmul.mubr.bf16.gmra.mxu0 %v1943
        %v1996 = vpop.f32.mrf.mxu0
        %v1997 = vadd.f32 %v1876, %v1996
        %v1998 = vpop.f32.mrf.mxu0
        %v1999 = vpop.f32.mrf.mxu0
        %v2000 = vadd.f32 %v1879, %v1999
        %v2001 = vpop.f32.mrf.mxu0
        %2002 = vmatprep.mubr.bf16.mxu0 0
        %2003 = vmatmul.mubr.bf16.gmra.mxu0 %v1945
        %v2004 = vpop.f32.mrf.mxu0
        %v2005 = vadd.f32 %v1884, %v2004
        %v2006 = vpop.f32.mrf.mxu0
        %v2007 = vpop.f32.mrf.mxu0
        %v2008 = vadd.f32 %v1887, %v2007
        %v2009 = vpop.f32.mrf.mxu0
        %2010 = vmatprep.mubr.bf16.mxu0 0
        %2011 = vmatmul.mubr.bf16.gmra.mxu0 %v1947
        %v2012 = vpop.f32.mrf.mxu0
        %v2013 = vadd.f32 %v1892, %v2012
        %v2014 = vpop.f32.mrf.mxu0
        %v2015 = vpop.f32.mrf.mxu0
        %v2016 = vadd.f32 %v1895, %v2015
        %v2017 = vpop.f32.mrf.mxu0
        %2018 = vmatprep.mubr.bf16.mxu0 0
        %2019 = vmatmul.mubr.bf16.gmra.mxu0 %v1949
        %v2020 = vpop.f32.mrf.mxu0
        %v2021 = vadd.f32 %v1900, %v2020
        %v2022 = vpop.f32.mrf.mxu0
        %v2023 = vpop.f32.mrf.mxu0
        %v2024 = vadd.f32 %v1903, %v2023
        %v2025 = vpop.f32.mrf.mxu0
        %2026 = vmatprep.mubr.bf16.mxu0 0
        %2027 = vmatmul.mubr.bf16.gmra.mxu0 %v1951
        %v2028 = vpop.f32.mrf.mxu0
        %v2029 = vadd.f32 %v1908, %v2028
        %v2030 = vpop.f32.mrf.mxu0
        %v2031 = vpop.f32.mrf.mxu0
        %v2032 = vadd.f32 %v1911, %v2031
        %v2033 = vpop.f32.mrf.mxu0
        %2034 = vmatprep.mubr.bf16.mxu0 0
        %2035 = vmatmul.mubr.bf16.gmra.mxu0 %v1953
        %v2036 = vpop.f32.mrf.mxu0
        %v2037 = vadd.f32 %v1916, %v2036
        %v2038 = vpop.f32.mrf.mxu0
        %v2039 = vpop.f32.mrf.mxu0
        %v2040 = vadd.f32 %v1919, %v2039
        %v2041 = vpop.f32.mrf.mxu0
        %2042 = vmatprep.mubr.bf16.mxu0 0
        %2043 = vmatmul.mubr.bf16.gmra.mxu0 %v1955
        %v2044 = vpop.f32.mrf.mxu0
        %v2045 = vadd.f32 %v1924, %v2044
        %v2046 = vpop.f32.mrf.mxu0
        %v2047 = vpop.f32.mrf.mxu0
        %v2048 = vadd.f32 %v1927, %v2047
        %v2049 = vpop.f32.mrf.mxu0
        %2050 = vmatprep.mubr.bf16.mxu0 0
        %2051 = vmatmul.mubr.bf16.gmra.mxu0 %v1957
        %v2052 = vpop.f32.mrf.mxu0
        %v2053 = vadd.f32 %v1932, %v2052
        %v2054 = vpop.f32.mrf.mxu0
        %v2055 = vpop.f32.mrf.mxu0
        %v2056 = vadd.f32 %v1935, %v2055
        %v2057 = vpop.f32.mrf.mxu0
        %2058 = vdwg.mxu0
        %s2059 = scalar_lea.vmem [#allocation2], 24
        %v2060 = vld [vmem:[%s2059] sm:$0xf]
        %v2061 = vld [vmem:[%s2059 + $0x4] sm:$0xf]
        %v2062 = vld [vmem:[%s2059 + $0xc] sm:$0xf]
        %v2063 = vld [vmem:[%s2059 + $0x10] sm:$0xf]
        %v2064 = vld [vmem:[%s2059 + $0x18] sm:$0xf]
        %v2065 = vld [vmem:[%s2059 + $0x1c] sm:$0xf]
        %v2066 = vld [vmem:[%s2059 + $0x24] sm:$0xf]
        %v2067 = vld [vmem:[%s2059 + $0x28] sm:$0xf]
        %v2068 = vld [vmem:[%s2059 + $0x30] sm:$0xf]
        %v2069 = vld [vmem:[%s2059 + $0x34] sm:$0xf]
        %v2070 = vld [vmem:[%s2059 + $0x3c] sm:$0xf]
        %v2071 = vld [vmem:[%s2059 + $0x40] sm:$0xf]
        %v2072 = vld [vmem:[%s2059 + $0x48] sm:$0xf]
        %v2073 = vld [vmem:[%s2059 + $0x4c] sm:$0xf]
        %v2074 = vld [vmem:[%s2059 + $0x54] sm:$0xf]
        %v2075 = vld [vmem:[%s2059 + $0x58] sm:$0xf]
        %v2076 = vld [vmem:[%s2059 + $0x8] sm:$0x1]
        %v2077 = vld [vmem:[%s2059 + $0x14] sm:$0x1]
        %v2078 = vld [vmem:[%s2059 + $0x20] sm:$0x1]
        %v2079 = vld [vmem:[%s2059 + $0x2c] sm:$0x1]
        %v2080 = vld [vmem:[%s2059 + $0x38] sm:$0x1]
        %v2081 = vld [vmem:[%s2059 + $0x44] sm:$0x1]
        %v2082 = vld [vmem:[%s2059 + $0x50] sm:$0x1]
        %v2083 = vld [vmem:[%s2059 + $0x5c] sm:$0x1]
        %v2084 = vld [vmem:[%s2059] sm:$0xe]
        %v2085 = vld [vmem:[%s2059 + $0xc] sm:$0xe]
        %v2086 = vld [vmem:[%s2059 + $0x18] sm:$0xe]
        %v2087 = vld [vmem:[%s2059 + $0x24] sm:$0xe]
        %v2088 = vld [vmem:[%s2059 + $0x30] sm:$0xe]
        %v2089 = vld [vmem:[%s2059 + $0x3c] sm:$0xe]
        %v2090 = vld [vmem:[%s2059 + $0x48] sm:$0xe]
        %v2091 = vld [vmem:[%s2059 + $0x54] sm:$0xe]
        %v2108 = vunpack.c.l.b16 %v2060
        %v2109 = vunpack.c.l.b16 %v2061
        %v2110 = vunpack.c.l.b16 %v2062
        %v2111 = vunpack.c.l.b16 %v2063
        %v2112 = vunpack.c.l.b16 %v2064
        %v2113 = vunpack.c.l.b16 %v2065
        %v2114 = vunpack.c.l.b16 %v2066
        %v2115 = vunpack.c.l.b16 %v2067
        %v2116 = vunpack.c.l.b16 %v2068
        %v2117 = vunpack.c.l.b16 %v2069
        %v2118 = vunpack.c.l.b16 %v2070
        %v2119 = vunpack.c.l.b16 %v2071
        %v2120 = vunpack.c.l.b16 %v2072
        %v2121 = vunpack.c.l.b16 %v2073
        %v2122 = vunpack.c.l.b16 %v2074
        %v2123 = vunpack.c.l.b16 %v2075
        %v2124 = vpack.c.b16 %v2109, %v2108
        %v2125 = vpack.c.b16 %v2111, %v2110
        %v2126 = vpack.c.b16 %v2113, %v2112
        %v2127 = vpack.c.b16 %v2115, %v2114
        %v2128 = vpack.c.b16 %v2117, %v2116
        %v2129 = vpack.c.b16 %v2119, %v2118
        %v2130 = vpack.c.b16 %v2121, %v2120
        %v2131 = vpack.c.b16 %v2123, %v2122
        %v2140 = vunpack.c.l.b16 %v2076
        %v2141 = vunpack.c.l.b16 %v2077
        %v2142 = vunpack.c.l.b16 %v2078
        %v2143 = vunpack.c.l.b16 %v2079
        %v2144 = vunpack.c.l.b16 %v2080
        %v2145 = vunpack.c.l.b16 %v2081
        %v2146 = vunpack.c.l.b16 %v2082
        %v2147 = vunpack.c.l.b16 %v2083
        %v2148 = vpack.c.b16 %v2140, %v2140
        %v2149 = vpack.c.b16 %v2141, %v2141
        %v2150 = vpack.c.b16 %v2142, %v2142
        %v2151 = vpack.c.b16 %v2143, %v2143
        %v2152 = vpack.c.b16 %v2144, %v2144
        %v2153 = vpack.c.b16 %v2145, %v2145
        %v2154 = vpack.c.b16 %v2146, %v2146
        %v2155 = vpack.c.b16 %v2147, %v2147
        %v2157 = vshrl.u32 %v2124, 16
        %v2159 = vshll.u32 %v2124, 16
        %v2161 = vrot.slane %v2159, 1
        %v2162 = vor.u32 %v2157, %v2161
        %v2164 = vshll.u32 %v2148, 16
        %v2166 = vrot.slane %v2164, 1
        %v2167 = vsel %vm1294, %v2162, %v2166
        %v2169 = vshrl.u32 %v2125, 16
        %v2171 = vshll.u32 %v2125, 16
        %v2173 = vrot.slane %v2171, 1
        %v2174 = vor.u32 %v2169, %v2173
        %v2176 = vshll.u32 %v2149, 16
        %v2178 = vrot.slane %v2176, 1
        %v2179 = vsel %vm1294, %v2174, %v2178
        %v2181 = vshrl.u32 %v2126, 16
        %v2183 = vshll.u32 %v2126, 16
        %v2185 = vrot.slane %v2183, 1
        %v2186 = vor.u32 %v2181, %v2185
        %v2188 = vshll.u32 %v2150, 16
        %v2190 = vrot.slane %v2188, 1
        %v2191 = vsel %vm1294, %v2186, %v2190
        %v2193 = vshrl.u32 %v2127, 16
        %v2195 = vshll.u32 %v2127, 16
        %v2197 = vrot.slane %v2195, 1
        %v2198 = vor.u32 %v2193, %v2197
        %v2200 = vshll.u32 %v2151, 16
        %v2202 = vrot.slane %v2200, 1
        %v2203 = vsel %vm1294, %v2198, %v2202
        %v2205 = vshrl.u32 %v2128, 16
        %v2207 = vshll.u32 %v2128, 16
        %v2209 = vrot.slane %v2207, 1
        %v2210 = vor.u32 %v2205, %v2209
        %v2212 = vshll.u32 %v2152, 16
        %v2214 = vrot.slane %v2212, 1
        %v2215 = vsel %vm1294, %v2210, %v2214
        %v2217 = vshrl.u32 %v2129, 16
        %v2219 = vshll.u32 %v2129, 16
        %v2221 = vrot.slane %v2219, 1
        %v2222 = vor.u32 %v2217, %v2221
        %v2224 = vshll.u32 %v2153, 16
        %v2226 = vrot.slane %v2224, 1
        %v2227 = vsel %vm1294, %v2222, %v2226
        %v2229 = vshrl.u32 %v2130, 16
        %v2231 = vshll.u32 %v2130, 16
        %v2233 = vrot.slane %v2231, 1
        %v2234 = vor.u32 %v2229, %v2233
        %v2236 = vshll.u32 %v2154, 16
        %v2238 = vrot.slane %v2236, 1
        %v2239 = vsel %vm1294, %v2234, %v2238
        %v2241 = vshrl.u32 %v2131, 16
        %v2243 = vshll.u32 %v2131, 16
        %v2245 = vrot.slane %v2243, 1
        %v2246 = vor.u32 %v2241, %v2245
        %v2248 = vshll.u32 %v2155, 16
        %v2250 = vrot.slane %v2248, 1
        %v2251 = vsel %vm1294, %v2246, %v2250
        %2252 = vrot.lane.b32.xlu0 %v2167, 4
        %v2253 = vpop.permute.xlu0 %2252
        %2254 = vrot.lane.b32.xlu0 %v2179, 4
        %v2255 = vpop.permute.xlu0 %2254
        %2256 = vrot.lane.b32.xlu0 %v2191, 4
        %v2257 = vpop.permute.xlu0 %2256
        %2258 = vrot.lane.b32.xlu0 %v2203, 4
        %v2259 = vpop.permute.xlu0 %2258
        %2260 = vrot.lane.b32.xlu0 %v2215, 4
        %v2261 = vpop.permute.xlu0 %2260
        %2262 = vrot.lane.b32.xlu0 %v2227, 4
        %v2263 = vpop.permute.xlu0 %2262
        %2264 = vrot.lane.b32.xlu0 %v2239, 4
        %v2265 = vpop.permute.xlu0 %2264
        %2266 = vrot.lane.b32.xlu0 %v2251, 4
        %v2267 = vpop.permute.xlu0 %2266
        %v2276 = vunpack.c.l.b16 %v2084
        %v2277 = vunpack.c.l.b16 %v2085
        %v2278 = vunpack.c.l.b16 %v2086
        %v2279 = vunpack.c.l.b16 %v2087
        %v2280 = vunpack.c.l.b16 %v2088
        %v2281 = vunpack.c.l.b16 %v2089
        %v2282 = vunpack.c.l.b16 %v2090
        %v2283 = vunpack.c.l.b16 %v2091
        %v2284 = vpack.c.b16 %v2109, %v2276
        %v2285 = vpack.c.b16 %v2111, %v2277
        %v2286 = vpack.c.b16 %v2113, %v2278
        %v2287 = vpack.c.b16 %v2115, %v2279
        %v2288 = vpack.c.b16 %v2117, %v2280
        %v2289 = vpack.c.b16 %v2119, %v2281
        %v2290 = vpack.c.b16 %v2121, %v2282
        %v2291 = vpack.c.b16 %v2123, %v2283
        %v2292 = vrot.slane %v2284, 1
        %v2293 = vrot.slane %v2148, 1
        %v2294 = vsel %vm1431, %v2292, %v2293
        %v2295 = vrot.slane %v2285, 1
        %v2296 = vrot.slane %v2149, 1
        %v2297 = vsel %vm1431, %v2295, %v2296
        %v2298 = vrot.slane %v2286, 1
        %v2299 = vrot.slane %v2150, 1
        %v2300 = vsel %vm1431, %v2298, %v2299
        %v2301 = vrot.slane %v2287, 1
        %v2302 = vrot.slane %v2151, 1
        %v2303 = vsel %vm1431, %v2301, %v2302
        %v2304 = vrot.slane %v2288, 1
        %v2305 = vrot.slane %v2152, 1
        %v2306 = vsel %vm1431, %v2304, %v2305
        %v2307 = vrot.slane %v2289, 1
        %v2308 = vrot.slane %v2153, 1
        %v2309 = vsel %vm1431, %v2307, %v2308
        %v2310 = vrot.slane %v2290, 1
        %v2311 = vrot.slane %v2154, 1
        %v2312 = vsel %vm1431, %v2310, %v2311
        %v2313 = vrot.slane %v2291, 1
        %v2314 = vrot.slane %v2155, 1
        %v2315 = vsel %vm1431, %v2313, %v2314
        %2316 = vrot.lane.b32.xlu0 %v2294, 8
        %v2317 = vpop.permute.xlu0 %2316
        %2318 = vrot.lane.b32.xlu0 %v2297, 8
        %v2319 = vpop.permute.xlu0 %2318
        %2320 = vrot.lane.b32.xlu0 %v2300, 8
        %v2321 = vpop.permute.xlu0 %2320
        %2322 = vrot.lane.b32.xlu0 %v2303, 8
        %v2323 = vpop.permute.xlu0 %2322
        %2324 = vrot.lane.b32.xlu0 %v2306, 8
        %v2325 = vpop.permute.xlu0 %2324
        %2326 = vrot.lane.b32.xlu0 %v2309, 8
        %v2327 = vpop.permute.xlu0 %2326
        %2328 = vrot.lane.b32.xlu0 %v2312, 8
        %v2329 = vpop.permute.xlu0 %2328
        %2330 = vrot.lane.b32.xlu0 %v2315, 8
        %v2331 = vpop.permute.xlu0 %2330
        %v2333 = vsel %vm1472, %v2124, %v2253
        %v2335 = vsel %vm1472, %v2125, %v2255
        %v2337 = vsel %vm1472, %v2126, %v2257
        %v2339 = vsel %vm1472, %v2127, %v2259
        %v2341 = vsel %vm1472, %v2128, %v2261
        %v2343 = vsel %vm1472, %v2129, %v2263
        %v2345 = vsel %vm1472, %v2130, %v2265
        %v2347 = vsel %vm1472, %v2131, %v2267
        %v2349 = vsel %vm1489, %v2333, %v2317
        %v2351 = vsel %vm1489, %v2335, %v2319
        %v2353 = vsel %vm1489, %v2337, %v2321
        %v2355 = vsel %vm1489, %v2339, %v2323
        %v2357 = vsel %vm1489, %v2341, %v2325
        %v2359 = vsel %vm1489, %v2343, %v2327
        %v2361 = vsel %vm1489, %v2345, %v2329
        %v2363 = vsel %vm1489, %v2347, %v2331
        %s2364 = scalar_lea.vmem %s5, 16
        %v2365 = vld [vmem:[%s2364] sm:$0xf]
        %v2366 = vld [vmem:[%s2364 + $0x4] sm:$0x3]
        %v2369 = vunpack.c.l.b16 %v2365
        %v2370 = vunpack.c.l.b16 %v2366
        %v2371 = vpack.c.b16 %v2370, %v2369
        %v2372 = vsel %vm1820, %v2349, 0
        %v2374 = vsel %vm1820, %v2351, 0
        %v2376 = vsel %vm1820, %v2353, 0
        %v2378 = vsel %vm1820, %v2355, 0
        %v2380 = vsel %vm1820, %v2357, 0
        %v2382 = vsel %vm1820, %v2359, 0
        %v2384 = vsel %vm1820, %v2361, 0
        %v2386 = vsel %vm1820, %v2363, 0
        %v2389 = vsel %vm1837, %v2371, 0
        %2391 = vmatprep.subr.bf16.mxu0 0
        %2392 = vmatpush1.bf16.msra.mxu0 0
        %2393 = vmatprep.subr.bf16.mxu0 0
        %2394 = vmatpush1.bf16.msra.mxu0 0
        %2395 = vmatprep.subr.bf16.mxu0 0
        %2396 = vmatpush1.bf16.msra.mxu0 0
        %2397 = vmatprep.subr.bf16.mxu0 0
        %2398 = vmatpush1.bf16.msra.mxu0 0
        %2399 = vmatprep.subr.bf16.mxu0 0
        %2400 = vmatpush1.bf16.msra.mxu0 0
        %2401 = vmatprep.subr.bf16.mxu0 0
        %2402 = vmatpush1.bf16.msra.mxu0 0
        %2403 = vmatprep.subr.bf16.mxu0 0
        %2404 = vmatpush1.bf16.msra.mxu0 0
        %2405 = vmatprep.subr.bf16.mxu0 0
        %2406 = vmatpush1.bf16.msra.mxu0 %v2389
        %2407 = vmatprep.subr.bf16.mxu0 0
        %2408 = vmatpush2.bf16.msra.mxu0 0
        %2409 = vmatprep.subr.bf16.mxu0 0
        %2410 = vmatpush2.bf16.msra.mxu0 0
        %2411 = vmatprep.subr.bf16.mxu0 0
        %2412 = vmatpush2.bf16.msra.mxu0 0
        %2413 = vmatprep.subr.bf16.mxu0 0
        %2414 = vmatpush2.bf16.msra.mxu0 0
        %2415 = vmatprep.subr.bf16.mxu0 0
        %2416 = vmatpush2.bf16.msra.mxu0 0
        %2417 = vmatprep.subr.bf16.mxu0 0
        %2418 = vmatpush2.bf16.msra.mxu0 0
        %2419 = vmatprep.subr.bf16.mxu0 0
        %2420 = vmatpush2.bf16.msra.mxu0 0
        %2421 = vmatprep.subr.bf16.mxu0 0
        %2422 = vmatpush2.bf16.msra.mxu0 0
        %2423 = vmatprep.mubr.bf16.mxu0 0
        %2424 = vmatmul.mubr.bf16.gmra.mxu0 %v2372
        %v2425 = vpop.f32.mrf.mxu0
        %v2426 = vadd.f32 0.0, %v2425
        %v2427 = vpop.f32.mrf.mxu0
        %v2428 = vpop.f32.mrf.mxu0
        %v2429 = vadd.f32 0.0, %v2428
        %v2430 = vpop.f32.mrf.mxu0
        %2431 = vmatprep.mubr.bf16.mxu0 0
        %2432 = vmatmul.mubr.bf16.gmra.mxu0 %v2374
        %v2433 = vpop.f32.mrf.mxu0
        %v2434 = vadd.f32 0.0, %v2433
        %v2435 = vpop.f32.mrf.mxu0
        %v2436 = vpop.f32.mrf.mxu0
        %v2437 = vadd.f32 0.0, %v2436
        %v2438 = vpop.f32.mrf.mxu0
        %2439 = vmatprep.mubr.bf16.mxu0 0
        %2440 = vmatmul.mubr.bf16.gmra.mxu0 %v2376
        %v2441 = vpop.f32.mrf.mxu0
        %v2442 = vadd.f32 0.0, %v2441
        %v2443 = vpop.f32.mrf.mxu0
        %v2444 = vpop.f32.mrf.mxu0
        %v2445 = vadd.f32 0.0, %v2444
        %v2446 = vpop.f32.mrf.mxu0
        %2447 = vmatprep.mubr.bf16.mxu0 0
        %2448 = vmatmul.mubr.bf16.gmra.mxu0 %v2378
        %v2449 = vpop.f32.mrf.mxu0
        %v2450 = vadd.f32 0.0, %v2449
        %v2451 = vpop.f32.mrf.mxu0
        %v2452 = vpop.f32.mrf.mxu0
        %v2453 = vadd.f32 0.0, %v2452
        %v2454 = vpop.f32.mrf.mxu0
        %2455 = vmatprep.mubr.bf16.mxu0 0
        %2456 = vmatmul.mubr.bf16.gmra.mxu0 %v2380
        %v2457 = vpop.f32.mrf.mxu0
        %v2458 = vadd.f32 0.0, %v2457
        %v2459 = vpop.f32.mrf.mxu0
        %v2460 = vpop.f32.mrf.mxu0
        %v2461 = vadd.f32 0.0, %v2460
        %v2462 = vpop.f32.mrf.mxu0
        %2463 = vmatprep.mubr.bf16.mxu0 0
        %2464 = vmatmul.mubr.bf16.gmra.mxu0 %v2382
        %v2465 = vpop.f32.mrf.mxu0
        %v2466 = vadd.f32 0.0, %v2465
        %v2467 = vpop.f32.mrf.mxu0
        %v2468 = vpop.f32.mrf.mxu0
        %v2469 = vadd.f32 0.0, %v2468
        %v2470 = vpop.f32.mrf.mxu0
        %2471 = vmatprep.mubr.bf16.mxu0 0
        %2472 = vmatmul.mubr.bf16.gmra.mxu0 %v2384
        %v2473 = vpop.f32.mrf.mxu0
        %v2474 = vadd.f32 0.0, %v2473
        %v2475 = vpop.f32.mrf.mxu0
        %v2476 = vpop.f32.mrf.mxu0
        %v2477 = vadd.f32 0.0, %v2476
        %v2478 = vpop.f32.mrf.mxu0
        %2479 = vmatprep.mubr.bf16.mxu0 0
        %2480 = vmatmul.mubr.bf16.gmra.mxu0 %v2386
        %v2481 = vpop.f32.mrf.mxu0
        %v2482 = vadd.f32 0.0, %v2481
        %v2483 = vpop.f32.mrf.mxu0
        %v2484 = vpop.f32.mrf.mxu0
        %v2485 = vadd.f32 0.0, %v2484
        %v2486 = vpop.f32.mrf.mxu0
        %2487 = vdwg.mxu0
        %v2488 = vadd.f32 %v1997, %v2426
        %v2489 = vadd.f32 %v2000, %v2429
        %v2490 = vadd.f32 %v2005, %v2434
        %v2491 = vadd.f32 %v2008, %v2437
        %v2492 = vadd.f32 %v2013, %v2442
        %v2493 = vadd.f32 %v2016, %v2445
        %v2494 = vadd.f32 %v2021, %v2450
        %v2495 = vadd.f32 %v2024, %v2453
        %v2496 = vadd.f32 %v2029, %v2458
        %v2497 = vadd.f32 %v2032, %v2461
        %v2498 = vadd.f32 %v2037, %v2466
        %v2499 = vadd.f32 %v2040, %v2469
        %v2500 = vadd.f32 %v2045, %v2474
        %v2501 = vadd.f32 %v2048, %v2477
        %v2502 = vadd.f32 %v2053, %v2482
        %v2503 = vadd.f32 %v2056, %v2485
        %v2504 = vld [vmem:[%s6] sm:$0x1]
        %v2506 = vlaneseq
        %v2507 = vshrl.u32 %v2506, 7
        %v2508 = vsub.s32 0, %v2507
        %v2509 = vrot.slane %v2504, %v2508
        %v2511 = vadd.f32 %v2488, %v2509
        %v2512 = vadd.f32 %v2489, %v2509
        %v2513 = vadd.f32 %v2490, %v2509
        %v2514 = vadd.f32 %v2491, %v2509
        %v2515 = vadd.f32 %v2492, %v2509
        %v2516 = vadd.f32 %v2493, %v2509
        %v2517 = vadd.f32 %v2494, %v2509
        %v2518 = vadd.f32 %v2495, %v2509
        %v2519 = vadd.f32 %v2496, %v2509
        %v2520 = vadd.f32 %v2497, %v2509
        %v2521 = vadd.f32 %v2498, %v2509
        %v2522 = vadd.f32 %v2499, %v2509
        %v2523 = vadd.f32 %v2500, %v2509
        %v2524 = vadd.f32 %v2501, %v2509
        %v2525 = vadd.f32 %v2502, %v2509
        %v2526 = vadd.f32 %v2503, %v2509
        %v2527 = vmax.f32 %v2511, 0.0
        %v2528 = vmax.f32 %v2512, 0.0
        %v2529 = vmax.f32 %v2513, 0.0
        %v2530 = vmax.f32 %v2514, 0.0
        %v2531 = vmax.f32 %v2515, 0.0
        %v2532 = vmax.f32 %v2516, 0.0
        %v2533 = vmax.f32 %v2517, 0.0
        %v2534 = vmax.f32 %v2518, 0.0
        %v2535 = vmax.f32 %v2519, 0.0
        %v2536 = vmax.f32 %v2520, 0.0
        %v2537 = vmax.f32 %v2521, 0.0
        %v2538 = vmax.f32 %v2522, 0.0
        %v2539 = vmax.f32 %v2523, 0.0
        %v2540 = vmax.f32 %v2524, 0.0
        %v2541 = vmax.f32 %v2525, 0.0
        %v2542 = vmax.f32 %v2526, 0.0
        %v2543 = vpack.c.bf16 %v2528, %v2527
        %v2544 = vpack.c.bf16 %v2530, %v2529
        %v2545 = vpack.c.bf16 %v2532, %v2531
        %v2546 = vpack.c.bf16 %v2534, %v2533
        %v2547 = vpack.c.bf16 %v2536, %v2535
        %v2548 = vpack.c.bf16 %v2538, %v2537
        %v2549 = vpack.c.bf16 %v2540, %v2539
        %v2550 = vpack.c.bf16 %v2542, %v2541
        %v2551 = vld [vmem:[%s7] sm:$0x3]
        %v2552 = vld [vmem:[%s8] sm:$0x1]
        %v2554 = vlaneseq
        %v2555 = vshrl.u32 %v2554, 7
        %v2556 = vsub.s32 0, %v2555
        %v2557 = vrot.slane %v2552, %v2556
        %v2560 = vsel %vm1472, %v2543, 0
        %v2563 = vsel %vm1472, %v2544, 0
        %v2566 = vsel %vm1472, %v2545, 0
        %v2569 = vsel %vm1472, %v2546, 0
        %v2572 = vsel %vm1472, %v2547, 0
        %v2575 = vsel %vm1472, %v2548, 0
        %v2578 = vsel %vm1472, %v2549, 0
        %v2581 = vsel %vm1472, %v2550, 0
        %vm2583 = vcmask 1041408
        %v2585 = vsel %vm2583, %v2551, 0
        %2587 = vmatprep.subr.bf16.mxu0 0
        %2588 = vmatpush1.bf16.msra.mxu0 0
        %2589 = vmatprep.subr.bf16.mxu0 0
        %2590 = vmatpush1.bf16.msra.mxu0 0
        %2591 = vmatprep.subr.bf16.mxu0 0
        %2592 = vmatpush1.bf16.msra.mxu0 0
        %2593 = vmatprep.subr.bf16.mxu0 0
        %2594 = vmatpush1.bf16.msra.mxu0 0
        %2595 = vmatprep.subr.bf16.mxu0 0
        %2596 = vmatpush1.bf16.msra.mxu0 0
        %2597 = vmatprep.subr.bf16.mxu0 0
        %2598 = vmatpush1.bf16.msra.mxu0 0
        %2599 = vmatprep.subr.bf16.mxu0 0
        %2600 = vmatpush1.bf16.msra.mxu0 0
        %2601 = vmatprep.subr.bf16.mxu0 0
        %2602 = vmatpush1.bf16.msra.mxu0 %v2585
        %2603 = vmatprep.subr.bf16.mxu0 0
        %2604 = vmatpush2.bf16.msra.mxu0 0
        %2605 = vmatprep.subr.bf16.mxu0 0
        %2606 = vmatpush2.bf16.msra.mxu0 0
        %2607 = vmatprep.subr.bf16.mxu0 0
        %2608 = vmatpush2.bf16.msra.mxu0 0
        %2609 = vmatprep.subr.bf16.mxu0 0
        %2610 = vmatpush2.bf16.msra.mxu0 0
        %2611 = vmatprep.subr.bf16.mxu0 0
        %2612 = vmatpush2.bf16.msra.mxu0 0
        %2613 = vmatprep.subr.bf16.mxu0 0
        %2614 = vmatpush2.bf16.msra.mxu0 0
        %2615 = vmatprep.subr.bf16.mxu0 0
        %2616 = vmatpush2.bf16.msra.mxu0 0
        %2617 = vmatprep.subr.bf16.mxu0 0
        %2618 = vmatpush2.bf16.msra.mxu0 0
        %2619 = vmatprep.mubr.bf16.mxu0 0
        %2620 = vmatmul.mubr.bf16.gmra.mxu0 %v2560
        %v2621 = vpop.f32.mrf.mxu0
        %v2622 = vadd.f32 %v2557, %v2621
        %v2623 = vpop.f32.mrf.mxu0
        %v2624 = vpop.f32.mrf.mxu0
        %v2625 = vadd.f32 %v2557, %v2624
        %v2626 = vpop.f32.mrf.mxu0
        %2627 = vmatprep.mubr.bf16.mxu0 0
        %2628 = vmatmul.mubr.bf16.gmra.mxu0 %v2563
        %v2629 = vpop.f32.mrf.mxu0
        %v2630 = vadd.f32 %v2557, %v2629
        %v2631 = vpop.f32.mrf.mxu0
        %v2632 = vpop.f32.mrf.mxu0
        %v2633 = vadd.f32 %v2557, %v2632
        %v2634 = vpop.f32.mrf.mxu0
        %2635 = vmatprep.mubr.bf16.mxu0 0
        %2636 = vmatmul.mubr.bf16.gmra.mxu0 %v2566
        %v2637 = vpop.f32.mrf.mxu0
        %v2638 = vadd.f32 %v2557, %v2637
        %v2639 = vpop.f32.mrf.mxu0
        %v2640 = vpop.f32.mrf.mxu0
        %v2641 = vadd.f32 %v2557, %v2640
        %v2642 = vpop.f32.mrf.mxu0
        %2643 = vmatprep.mubr.bf16.mxu0 0
        %2644 = vmatmul.mubr.bf16.gmra.mxu0 %v2569
        %v2645 = vpop.f32.mrf.mxu0
        %v2646 = vadd.f32 %v2557, %v2645
        %v2647 = vpop.f32.mrf.mxu0
        %v2648 = vpop.f32.mrf.mxu0
        %v2649 = vadd.f32 %v2557, %v2648
        %v2650 = vpop.f32.mrf.mxu0
        %2651 = vmatprep.mubr.bf16.mxu0 0
        %2652 = vmatmul.mubr.bf16.gmra.mxu0 %v2572
        %v2653 = vpop.f32.mrf.mxu0
        %v2654 = vadd.f32 %v2557, %v2653
        %v2655 = vpop.f32.mrf.mxu0
        %v2656 = vpop.f32.mrf.mxu0
        %v2657 = vadd.f32 %v2557, %v2656
        %v2658 = vpop.f32.mrf.mxu0
        %2659 = vmatprep.mubr.bf16.mxu0 0
        %2660 = vmatmul.mubr.bf16.gmra.mxu0 %v2575
        %v2661 = vpop.f32.mrf.mxu0
        %v2662 = vadd.f32 %v2557, %v2661
        %v2663 = vpop.f32.mrf.mxu0
        %v2664 = vpop.f32.mrf.mxu0
        %v2665 = vadd.f32 %v2557, %v2664
        %v2666 = vpop.f32.mrf.mxu0
        %2667 = vmatprep.mubr.bf16.mxu0 0
        %2668 = vmatmul.mubr.bf16.gmra.mxu0 %v2578
        %v2669 = vpop.f32.mrf.mxu0
        %v2670 = vadd.f32 %v2557, %v2669
        %v2671 = vpop.f32.mrf.mxu0
        %v2672 = vpop.f32.mrf.mxu0
        %v2673 = vadd.f32 %v2557, %v2672
        %v2674 = vpop.f32.mrf.mxu0
        %2675 = vmatprep.mubr.bf16.mxu0 0
        %2676 = vmatmul.mubr.bf16.gmra.mxu0 %v2581
        %v2677 = vpop.f32.mrf.mxu0
        %v2678 = vadd.f32 %v2557, %v2677
        %v2679 = vpop.f32.mrf.mxu0
        %v2680 = vpop.f32.mrf.mxu0
        %v2681 = vadd.f32 %v2557, %v2680
        %v2682 = vpop.f32.mrf.mxu0
        %2683 = vdwg.mxu0
        %v2684 = vld [vmem:[%s416] sm:$0xff]
        %v2685 = vld [vmem:[%s416 + $0x8] sm:$0xff]
        %v2686 = vld [vmem:[%s416 + $0x10] sm:$0xff]
        %v2687 = vld [vmem:[%s416 + $0x18] sm:$0xff]
        %v2688 = vld [vmem:[%s416 + $0x20] sm:$0xff]
        %v2689 = vld [vmem:[%s416 + $0x28] sm:$0xff]
        %v2690 = vld [vmem:[%s416 + $0x30] sm:$0xff]
        %v2691 = vld [vmem:[%s416 + $0x38] sm:$0xff]
        %v2692 = vld [vmem:[%s416 + $0x40] sm:$0xff]
        %v2693 = vld [vmem:[%s416 + $0x48] sm:$0xff]
        %v2694 = vld [vmem:[%s416 + $0x50] sm:$0xff]
        %v2695 = vld [vmem:[%s416 + $0x58] sm:$0xff]
        %v2696 = vld [vmem:[%s416 + $0x60] sm:$0xff]
        %v2697 = vld [vmem:[%s416 + $0x68] sm:$0xff]
        %v2698 = vld [vmem:[%s416 + $0x70] sm:$0xff]
        %v2699 = vld [vmem:[%s416 + $0x78] sm:$0xff]
        %v2700 = vadd.f32 %v2622, %v2684
        %v2701 = vadd.f32 %v2625, %v2685
        %v2702 = vadd.f32 %v2630, %v2686
        %v2703 = vadd.f32 %v2633, %v2687
        %v2704 = vadd.f32 %v2638, %v2688
        %v2705 = vadd.f32 %v2641, %v2689
        %v2706 = vadd.f32 %v2646, %v2690
        %v2707 = vadd.f32 %v2649, %v2691
        %v2708 = vadd.f32 %v2654, %v2692
        %v2709 = vadd.f32 %v2657, %v2693
        %v2710 = vadd.f32 %v2662, %v2694
        %v2711 = vadd.f32 %v2665, %v2695
        %v2712 = vadd.f32 %v2670, %v2696
        %v2713 = vadd.f32 %v2673, %v2697
        %v2714 = vadd.f32 %v2678, %v2698
        %v2715 = vadd.f32 %v2681, %v2699
        %v2716 = vmax.f32 %v2700, 0.0
        %v2717 = vmax.f32 %v2701, 0.0
        %v2718 = vmax.f32 %v2702, 0.0
        %v2719 = vmax.f32 %v2703, 0.0
        %v2720 = vmax.f32 %v2704, 0.0
        %v2721 = vmax.f32 %v2705, 0.0
        %v2722 = vmax.f32 %v2706, 0.0
        %v2723 = vmax.f32 %v2707, 0.0
        %v2724 = vmax.f32 %v2708, 0.0
        %v2725 = vmax.f32 %v2709, 0.0
        %v2726 = vmax.f32 %v2710, 0.0
        %v2727 = vmax.f32 %v2711, 0.0
        %v2728 = vmax.f32 %v2712, 0.0
        %v2729 = vmax.f32 %v2713, 0.0
        %v2730 = vmax.f32 %v2714, 0.0
        %v2731 = vmax.f32 %v2715, 0.0
        %2732 = vst.msk [vmem:[%s478] sm:$0xff] %vm529, %v2716
        %2733 = vst.msk [vmem:[%s478 + $0x8] sm:$0xff] %vm529, %v2717
        %2734 = vst.msk [vmem:[%s478 + $0x10] sm:$0xff] %vm529, %v2718
        %2735 = vst.msk [vmem:[%s478 + $0x18] sm:$0xff] %vm529, %v2719
        %2736 = vst.msk [vmem:[%s478 + $0x20] sm:$0xff] %vm529, %v2720
        %2737 = vst.msk [vmem:[%s478 + $0x28] sm:$0xff] %vm529, %v2721
        %2738 = vst.msk [vmem:[%s478 + $0x30] sm:$0xff] %vm529, %v2722
        %2739 = vst.msk [vmem:[%s478 + $0x38] sm:$0xff] %vm529, %v2723
        %2740 = vst.msk [vmem:[%s478 + $0x40] sm:$0xff] %vm529, %v2724
        %2741 = vst.msk [vmem:[%s478 + $0x48] sm:$0xff] %vm529, %v2725
        %2742 = vst.msk [vmem:[%s478 + $0x50] sm:$0xff] %vm529, %v2726
        %2743 = vst.msk [vmem:[%s478 + $0x58] sm:$0xff] %vm529, %v2727
        %2744 = vst.msk [vmem:[%s478 + $0x60] sm:$0xff] %vm529, %v2728
        %2745 = vst.msk [vmem:[%s478 + $0x68] sm:$0xff] %vm529, %v2729
        %2746 = vst.msk [vmem:[%s478 + $0x70] sm:$0xff] %vm529, %v2730
        %2747 = vst.msk [vmem:[%s478 + $0x78] sm:$0xff] %vm529, %v2731
        %s2748 = sand.u32 %s277, 1
        %s2749 = scalar_lea.sflag [#allocation5], %s2748
        %s2750 = sand.u32 %s277, 1
        %s2751 = smul.addr %s2750, 128
        %s2752 = scalar_lea.vmem [#allocation9], %s2751
        // Predicated region
        $region85: #{tpu_custom_call.1} parent=55 // pred_check
          %p2753 = pneg %p287
        $region86: #{tpu_custom_call.1} parent=55 // pred_check_branch
          %2755 = sbr.rel (%p2753) target = $region88
        $region87: #{tpu_custom_call.1} parent=55 // pred_region
          %s2756 = smul.u32 8, %s34
          %s2758 = ssub.s32 2048, 2048
          %2759 = vsyncadd %s2749, %s2758
          %s2760 = smul.addr %s2756, 2
          %s2761 = smul.addr %s33, 32
          %s2762 = sadd.s32 %s2760, %s2761
          %s2763 = smul.addr %s2762, 128
          %s2764 = scalar_lea.hbm %s9, %s2763
          %s2765 = sshll.u32 %s2752, 4
          %s2766 = int_to_ptr.vmem [resolvable:$true] %s2765
          %2771 = dma.vmem_to_hbm [thread:$0]  %s2766, 2048, %s2764, %s2749, 128, 128, 8
        $region88: #{tpu_custom_call.1} parent=55 // pred_fallthru
          _
      $region56: #{tpu_custom_call.1} parent=5 // pred_fallthru
        _
      %p2772 = scmp.le.s32.totalorder 2, %s24
      // Predicated region
      $region89: #{tpu_custom_call.1} parent=5 // pred_check
        %p2773 = pneg %p2772
      $region90: #{tpu_custom_call.1} parent=5 // pred_check_branch
        %2775 = sbr.rel (%p2773) target = $region92
      $region91: #{tpu_custom_call.1} parent=5 // pred_region
        %s2776 = ssub.s32 %s24, 2
        // Predicated region
        $region93: #{tpu_custom_call.1} parent=91 // pred_check
          %p2777 = pneg %p293
        $region94: #{tpu_custom_call.1} parent=91 // pred_check_branch
          %2779 = sbr.rel (%p2777) target = $region96
        $region95: #{tpu_custom_call.1} parent=91 // pred_region
          %s2780 = sand.u32 %s278, 1
          %s2781 = scalar_lea.sflag [#allocation5], %s2780
          %s2782 = sand.u32 %s278, 1
          %s2783 = smul.addr %s2782, 128
          %s2784 = scalar_lea.vmem [#allocation9], %s2783
          %2785 = dma.done %s2781, 2048
        $region96: #{tpu_custom_call.1} parent=91 // pred_fallthru
          _
      $region92: #{tpu_custom_call.1} parent=5 // pred_fallthru
        _
    $region6: #{tpu_custom_call.1} parent=1 // loop_footer
      %s28 = sadd.s32 1, %s24
    $region7: #{tpu_custom_call.1} parent=1 // loop_footer_branch
      %23 = sbr.rel target = $region3
    $region8: #{tpu_custom_call.1} parent=1 // loop_exit
      _
    %2786 = vsyncpa [#allocation4], 1
    %s2787 = scalar_lea.sflag [#allocation4], 1
    %2788 = vsyncpa %s2787, 1
    %2789 = vsyncpa [#allocation7], 1
    %s2790 = scalar_lea.sflag [#allocation7], 1
    %2791 = vsyncpa %s2790, 1
    %2792 = vsyncpa [#allocation5], 1
    %s2793 = scalar_lea.sflag [#allocation5], 1
    %2794 = vsyncpa %s2793, 1

</llo_original>
